<compile_context>
chip_gen: v5e
topology: v5e:2x2
jax: 0.10.0
libtpu: 0.0.40
codegen_flags: <defaults>
</compile_context>

<pallas_src>
import jax
import jax.numpy as jnp
from jax import lax
from jax.experimental import pallas as pl
from jax.experimental.pallas import tpu as pltpu


_VMEM_BLOCK_BUDGET = 8 * 1024 * 1024      # per-kernel budget for pipelined blocks
_VMEM_LIMIT_BYTES = 32 * 1024 * 1024      # explicit scoped-VMEM limit


# --------------------------------------------------------------------------
# tile-size helpers (VMEM-budget aware, sublane/lane friendly)
# --------------------------------------------------------------------------
def _batch_tile(Bp, max_tile=256):
    """Largest multiple-of-8 batch tile <= max_tile dividing Bp.  Once Bp is
    large, prefer >=2 tiles so the parallel grid axis can shard across the two
    v7x TensorCores."""
    cap = min(Bp, max_tile)
    if Bp >= 2 * 128:
        cap = min(cap, Bp // 2)
    cap -= cap % 8
    t = cap
    while t >= 8:
        if Bp % t == 0:
            return t
        t -= 8
    return Bp


def _gru_time_chunk(T, TB, E, H, budget_bytes, max_chunk=32):
    """Time-chunk length bounded by the VMEM cost of the pipelined x/out blocks
    plus the per-chunk xi scratch."""
    per_step = TB * (2 * 2 * E      # x block, bf16, double-buffered
                     + 2 * 2 * H    # out block, bf16, double-buffered
                     + 4 * 3 * H)   # xi scratch, f32, single
    cap = max(1, budget_bytes // max(per_step, 1))
    cap = min(cap, max_chunk, T)
    for t in range(cap, 0, -1):
        if T % t == 0:
            return t
    return 1


def _head_row_tile(N, H, V, budget_bytes, max_tile=512):
    """Row tile for the head: MXU-friendly (multiples of 256/128) and within
    the VMEM budget for the double-buffered x / out blocks."""
    per_row = 2 * 2 * H + 2 * 4 * V
    cap = max(8, budget_bytes // max(per_row, 1))
    cap = min(cap, max_tile, N)
    for align in (256, 128, 8):
        t = (cap // align) * align
        while t >= align:
            if N % t == 0:
                return t
            t -= align
    return N   # full-extent block is always legal


# --------------------------------------------------------------------------
# GRU recurrence with fused input projection.
# Grid = (batch tiles [parallel], time chunks [arbitrary]).
# Per grid step:
#   xi = reshape(x_chunk, (TT*TB, E)) @ W_ih + (b_ih + b_hh[r,z])   (f32 scratch)
#   for i in range(TT):                                   (serial, unrolled)
#     hh = h_bf16 @ W_hh
#     r = sigmoid(xi_r + hh_r); z = sigmoid(xi_z + hh_z)
#     n = tanh(xi_n + r * (hh_n + b_hn))
#     h' = (1 - z) * n + z * h
# PyTorch gate order [r, z, n]; h carried in f32 VMEM scratch across chunks.
# --------------------------------------------------------------------------
def _gru_kernel(x_ref, wih_ref, whh_ref, bproj_ref, bhn_ref, h0_ref,
                out_ref, hlast_ref, h_scratch, xi_scratch):
    tc = pl.program_id(1)          # time-chunk index (sequential axis)

    @pl.when(tc == 0)
    def _():
        h_scratch[...] = h0_ref[...]

    TT, TB, E = x_ref.shape
    H = h_scratch.shape[-1]

    # Fused input projection for the whole chunk: one big-M MXU pass.
    xi_scratch[...] = (
        jnp.dot(x_ref[...].reshape(TT * TB, E), wih_ref[...],
                preferred_element_type=jnp.float32)
        + bproj_ref[...]
    )

    whh = whh_ref[...]             # (H, 3H) bf16, resident
    b_hn = bhn_ref[...]            # (1, H)  f32

    def step(i, carry):
        h_f32, h_bf16 = carry
        row = pl.multiple_of(i * TB, 8)
        xi = xi_scratch[pl.ds(row, TB), :]                       # (TB, 3H) f32
        hh = jnp.dot(h_bf16, whh, preferred_element_type=jnp.float32)
        r = jax.nn.sigmoid(xi[:, :H] + hh[:, :H])
        z = jax.nn.sigmoid(xi[:, H:2 * H] + hh[:, H:2 * H])
        n = jnp.tanh(xi[:, 2 * H:] + r * (hh[:, 2 * H:] + b_hn))
        h_new = (1.0 - z) * n + z * h_f32
        h_new_bf16 = h_new.astype(out_ref.dtype)
        out_ref[i] = h_new_bf16        # bf16 HBM write, reused as next LHS
        return h_new, h_new_bf16

    h0 = h_scratch[...]
    h_final, _ = lax.fori_loop(0, TT, step, (h0, h0.astype(out_ref.dtype)),
                               unroll=min(TT, 8))
    h_scratch[...] = h_final
    # Same output block across the time axis -> only the last chunk persists.
    hlast_ref[...] = h_final


def run_gru(x_tbe, h0_p, w_ih, w_hh, b_proj, b_hn, hidden_dim):
    """x_tbe: (T, Bp, E) bf16 embeddings, time-major; h0_p: (Bp, H) f32.
    Returns (out (T, Bp, H) bf16, h_last (Bp, H) f32)."""
    T, Bp, E = x_tbe.shape
    H = hidden_dim
    H3 = 3 * H
    TB = _batch_tile(Bp)
    TT = _gru_time_chunk(T, TB, E, H, _VMEM_BLOCK_BUDGET)
    return pl.pallas_call(
        _gru_kernel,
        out_shape=(jax.ShapeDtypeStruct((T, Bp, H), jnp.bfloat16),
                   jax.ShapeDtypeStruct((Bp, H), jnp.float32)),
        grid=(Bp // TB, T // TT),
        in_specs=[
            pl.BlockSpec((TT, TB, E), lambda b, t: (t, b, 0)),
            pl.BlockSpec((E, H3), lambda b, t: (0, 0)),
            pl.BlockSpec((H, H3), lambda b, t: (0, 0)),
            pl.BlockSpec((1, H3), lambda b, t: (0, 0)),
            pl.BlockSpec((1, H), lambda b, t: (0, 0)),
            pl.BlockSpec((TB, H), lambda b, t: (b, 0)),
        ],
        out_specs=(
            pl.BlockSpec((TT, TB, H), lambda b, t: (t, b, 0)),
            pl.BlockSpec((TB, H), lambda b, t: (b, 0)),
        ),
        scratch_shapes=[pltpu.VMEM((TB, H), jnp.float32),
                        pltpu.VMEM((TT * TB, H3), jnp.float32)],
        compiler_params=pltpu.CompilerParams(
            dimension_semantics=("parallel", "arbitrary"),
            vmem_limit_bytes=_VMEM_LIMIT_BYTES),
    )(x_tbe, w_ih, w_hh, b_proj, b_hn, h0_p)


# --------------------------------------------------------------------------
# Linear head + log-softmax over the vocab axis, tiled over rows.
# --------------------------------------------------------------------------
def _head_kernel(x_ref, w_ref, b_ref, o_ref):
    logits = (
        jnp.dot(x_ref[...], w_ref[...], preferred_element_type=jnp.float32)
        + b_ref[...]
    )
    m = jnp.max(logits, axis=-1, keepdims=True)
    shifted = logits - m
    lse = jnp.log(jnp.sum(jnp.exp(shifted), axis=-1, keepdims=True))
    o_ref[...] = (shifted - lse).astype(o_ref.dtype)


def run_head(x_2d, w_hv, b_v):
    """x_2d: (N, H) bf16, w_hv: (H, V) bf16, b_v: (1, V) f32 -> (N, V) f32."""
    N, H = x_2d.shape
    V = w_hv.shape[-1]
    tn = _head_row_tile(N, H, V, _VMEM_BLOCK_BUDGET)
    return pl.pallas_call(
        _head_kernel,
        out_shape=jax.ShapeDtypeStruct((N, V), jnp.float32),
        grid=(N // tn,),
        in_specs=[
            pl.BlockSpec((tn, H), lambda i: (i, 0)),
            pl.BlockSpec((H, V), lambda i: (0, 0)),
            pl.BlockSpec((1, V), lambda i: (0, 0)),
        ],
        out_specs=pl.BlockSpec((tn, V), lambda i: (i, 0)),
        compiler_params=pltpu.CompilerParams(
            dimension_semantics=("parallel",),
            vmem_limit_bytes=_VMEM_LIMIT_BYTES),
    )(x_2d, w_hv, b_v)


# --------------------------------------------------------------------------
# Full model forward (embedding lookup stays in plain JAX glue).
# --------------------------------------------------------------------------
@jax.jit
def gru_model_forward(seq, params, h0=None):
    emb = params["embedding"]                      # (V, E) bf16
    B, T = seq.shape
    H = params["w_hh"].shape[0]
    V = params["w_lin"].shape[-1]

    # Pad batch to a sublane-dense multiple of 8 (>=128/256 at real scale).
    Bp = max(8, ((B + 7) // 8) * 8)
    seq_p = jnp.pad(seq, ((0, Bp - B), (0, 0)))    # padded rows -> token 0

    # Time-major bf16 activations: (T, Bp, E).
    x_tbe = jnp.take(emb, seq_p.T, axis=0)

    if h0 is None:
        h0_p = jnp.zeros((Bp, H), jnp.float32)
    else:
        h0_p = jnp.zeros((Bp, H), jnp.float32).at[:B].set(
            h0[0].astype(jnp.float32))

    out_tbh, h_last_p = run_gru(x_tbe, h0_p, params["w_ih"], params["w_hh"],
                                params["b_proj"], params["b_hn"], H)

    # Re-lay out the SMALL bf16 hidden tensor batch-major so the head output
    # reshapes straight into (B, T, V); the big logits tensor is never
    # transposed by XLA.
    x_bth = jnp.transpose(out_tbh, (1, 0, 2))[:B]            # (B, T, H) bf16

    # Dropout: identity in eval mode.
    logp = run_head(x_bth.reshape(B * T, H),
                    params["w_lin"], params["b_lin"]).reshape(B, T, V)
    hidden = h_last_p[:B][None]                              # (1, B, H) f32
    return logp, hidden


# --------------------------------------------------------------------------
# Parameters (PyTorch nn.GRU layout: gate order [r, z, n], pre-transposed and
# gate-concatenated to (E, 3H) / (H, 3H); MXU weights pre-cast to bf16 once).
# --------------------------------------------------------------------------
def init_params(key, vocab_size, emb_dim, hidden_dim):
    ks = jax.random.split(key, 7)
    H = hidden_dim
    scale = 1.0 / jnp.sqrt(hidden_dim)

    def u(k, shp):
        return jax.random.uniform(k, shp, minval=-scale, maxval=scale,
                                  dtype=jnp.float32)

    w_ih = u(ks[0], (emb_dim, 3 * H))     # columns = [r | z | n]
    w_hh = u(ks[1], (H, 3 * H))
    b_ih = u(ks[2], (3, H))
    b_hh = u(ks[3], (3, H))
    # Fold b_ih (all gates) + b_hh (r, z gates) into the hoisted projection;
    # b_hn must remain inside the r * (...) term of the n gate.
    b_proj = jnp.concatenate(
        [b_ih[0] + b_hh[0], b_ih[1] + b_hh[1], b_ih[2]])[None, :]   # (1, 3H)
    b_hn = b_hh[2][None, :]                                          # (1, H)

    embedding = jax.random.normal(ks[4], (vocab_size, emb_dim), jnp.float32)
    w_lin = u(ks[5], (hidden_dim, vocab_size))
    b_lin = u(ks[6], (1, vocab_size))
    return dict(embedding=embedding.astype(jnp.bfloat16),
                w_ih=w_ih.astype(jnp.bfloat16),
                w_hh=w_hh.astype(jnp.bfloat16),
                w_lin=w_lin.astype(jnp.bfloat16),
                b_proj=b_proj, b_hn=b_hn, b_lin=b_lin)


# --------------------------------------------------------------------------
# Pure-JAX (f32) reference for a loose numerical smoke check.
# --------------------------------------------------------------------------
def reference_forward(seq, params):
    emb = params["embedding"].astype(jnp.float32)
    x = jnp.take(emb, seq, axis=0)                 # (B, T, E)
    B, T, _ = x.shape
    w_ih = params["w_ih"].astype(jnp.float32)
    w_hh = params["w_hh"].astype(jnp.float32)
    H = w_hh.shape[0]
    b_proj, b_hn = params["b_proj"], params["b_hn"]

    def step(h, x_t):
        xi = x_t @ w_ih + b_proj
        hh = h @ w_hh
        r = jax.nn.sigmoid(xi[:, :H] + hh[:, :H])
        z = jax.nn.sigmoid(xi[:, H:2 * H] + hh[:, H:2 * H])
        n = jnp.tanh(xi[:, 2 * H:] + r * (hh[:, 2 * H:] + b_hn))
        h_new = (1.0 - z) * n + z * h
        return h_new, h_new

    h0 = jnp.zeros((B, H), jnp.float32)
    h_last, out = lax.scan(step, h0, jnp.transpose(x, (1, 0, 2)))
    out_bth = jnp.transpose(out, (1, 0, 2))
    logits = out_bth @ params["w_lin"].astype(jnp.float32) + params["b_lin"]
    return jax.nn.log_softmax(logits, axis=2), h_last[None]


if __name__ == "__main__":
    # Lane-dense small dims (multiples of 128) so gate slices stay tile-aligned.
    vocab_size, emb_dim, hidden_dim = 256, 128, 128
    B, T = 2, 8

    key = jax.random.PRNGKey(0)
    kp, ks = jax.random.split(key)
    params = init_params(kp, vocab_size, emb_dim, hidden_dim)
    seq = jax.random.randint(ks, (B, T), 0, vocab_size, dtype=jnp.int32)

    logp, hidden = gru_model_forward(seq, params)
    jax.block_until_ready((logp, hidden))

    assert logp.shape == (B, T, vocab_size)
    assert hidden.shape == (1, B, hidden_dim)
    # log-softmax rows must sum to ~1 in prob space.
    assert jnp.allclose(jnp.sum(jnp.exp(logp), axis=-1), 1.0, atol=1e-3)

    # Loose check against an f32 pure-JAX reference (kernels use bf16 MXU ops
    # and carry the hidden state through bf16 on the matmul path).
    logp_ref, hidden_ref = reference_forward(seq, params)
    assert jnp.allclose(logp, logp_ref, atol=1e-1), \
        float(jnp.max(jnp.abs(logp - logp_ref)))
    assert jnp.allclose(hidden, hidden_ref, atol=5e-2), \
        float(jnp.max(jnp.abs(hidden - hidden_ref)))

    print("KERNEL_OK")
</pallas_src>

<mosaic_0001>
module attributes {stable_mosaic.version = 11 : i64} {
  func.func @_gru_kernel(%arg0: i32, %arg1: i32, %arg2: memref<8x8x128xbf16, #tpu.memory_space<vmem>>, %arg3: memref<128x384xbf16, #tpu.memory_space<vmem>>, %arg4: memref<128x384xbf16, #tpu.memory_space<vmem>>, %arg5: memref<1x384xf32, #tpu.memory_space<vmem>>, %arg6: memref<1x128xf32, #tpu.memory_space<vmem>>, %arg7: memref<8x128xf32, #tpu.memory_space<vmem>>, %arg8: memref<8x8x128xbf16, #tpu.memory_space<vmem>>, %arg9: memref<8x128xf32, #tpu.memory_space<vmem>>, %arg10: memref<8x128xf32, #tpu.memory_space<vmem>>, %arg11: memref<64x384xf32, #tpu.memory_space<vmem>>) attributes {dimension_semantics = [#tpu.dimension_semantics<parallel>, #tpu.dimension_semantics<arbitrary>], iteration_bounds = array<i64: 1, 1>, scalar_prefetch = 0 : i64, scratch_operands = 2 : i64, tpu.core_type = #tpu.core_type<tc>, window_params = [{transform_indices = @transform_0, window_bounds = array<i64: 8, 8, 128>}, {pipeline_mode = #tpu.pipeline_mode<synchronous>, transform_indices = @transform_1, window_bounds = array<i64: 128, 384>}, {pipeline_mode = #tpu.pipeline_mode<synchronous>, transform_indices = @transform_2, window_bounds = array<i64: 128, 384>}, {pipeline_mode = #tpu.pipeline_mode<synchronous>, transform_indices = @transform_3, window_bounds = array<i64: 1, 384>}, {pipeline_mode = #tpu.pipeline_mode<synchronous>, transform_indices = @transform_4, window_bounds = array<i64: 1, 128>}, {transform_indices = @transform_5, window_bounds = array<i64: 8, 128>}, {transform_indices = @transform_6, window_bounds = array<i64: 8, 8, 128>}, {transform_indices = @transform_7, window_bounds = array<i64: 8, 128>}]} {
    %c0_i32 = arith.constant 0 : i32
    %0 = arith.cmpi eq, %arg1, %c0_i32 : i32
    %1 = arith.extui %0 : i1 to i32
    %c0_i32_0 = arith.constant 0 : i32
    %2 = arith.cmpi ne, %1, %c0_i32_0 : i32
    scf.if %2 {
      %c0_84 = arith.constant 0 : index
      %c0_85 = arith.constant 0 : index
      %321 = vector.load %arg7[%c0_84, %c0_85] : memref<8x128xf32, #tpu.memory_space<vmem>>, vector<8x128xf32>
      %c0_86 = arith.constant 0 : index
      %c0_87 = arith.constant 0 : index
      %322 = vector.load %arg10[%c0_86, %c0_87] : memref<8x128xf32, #tpu.memory_space<vmem>>, vector<8x128xf32>
      tpu.vector_store %arg10[%c0_86, %c0_87], %321 {strides = array<i32>} : memref<8x128xf32, #tpu.memory_space<vmem>>, vector<8x128xf32>,
    } else {
    }
    %c0 = arith.constant 0 : index
    %c0_1 = arith.constant 0 : index
    %c0_2 = arith.constant 0 : index
    %3 = vector.load %arg2[%c0, %c0_1, %c0_2] : memref<8x8x128xbf16, #tpu.memory_space<vmem>>, vector<8x8x128xbf16>
    %4 = vector.shape_cast %3 : vector<8x8x128xbf16> to vector<64x128xbf16>
    %c0_3 = arith.constant 0 : index
    %c0_4 = arith.constant 0 : index
    %5 = vector.load %arg3[%c0_3, %c0_4] : memref<128x384xbf16, #tpu.memory_space<vmem>>, vector<128x384xbf16>
    %cst = arith.constant dense<0.000000e+00> : vector<64x384xf32>
    %6 = tpu.matmul %4, %5, %cst {dimension_numbers = #tpu.dot_dimension_numbers<[1], [0], [0], [1], [0, 0, 1, 1], [], []>} : vector<64x128xbf16>, vector<128x384xbf16>, vector<64x384xf32> -> vector<64x384xf32>
    %c0_5 = arith.constant 0 : index
    %c0_6 = arith.constant 0 : index
    %7 = vector.load %arg5[%c0_5, %c0_6] : memref<1x384xf32, #tpu.memory_space<vmem>>, vector<1x384xf32>
    %8 = vector.broadcast %7 : vector<1x384xf32> to vector<64x384xf32>
    %9 = arith.addf %6, %8 : vector<64x384xf32>
    %c0_7 = arith.constant 0 : index
    %c0_8 = arith.constant 0 : index
    %10 = vector.load %arg11[%c0_7, %c0_8] : memref<64x384xf32, #tpu.memory_space<vmem>>, vector<64x384xf32>
    tpu.vector_store %arg11[%c0_7, %c0_8], %9 {strides = array<i32>} : memref<64x384xf32, #tpu.memory_space<vmem>>, vector<64x384xf32>,
    %c0_9 = arith.constant 0 : index
    %c0_10 = arith.constant 0 : index
    %11 = vector.load %arg4[%c0_9, %c0_10] : memref<128x384xbf16, #tpu.memory_space<vmem>>, vector<128x384xbf16>
    %c0_11 = arith.constant 0 : index
    %c0_12 = arith.constant 0 : index
    %12 = vector.load %arg6[%c0_11, %c0_12] : memref<1x128xf32, #tpu.memory_space<vmem>>, vector<1x128xf32>
    %c0_13 = arith.constant 0 : index
    %c0_14 = arith.constant 0 : index
    %13 = vector.load %arg10[%c0_13, %c0_14] : memref<8x128xf32, #tpu.memory_space<vmem>>, vector<8x128xf32>
    %14 = arith.truncf %13 : vector<8x128xf32> to vector<8x128xbf16>
    %c0_i32_15 = arith.constant 0 : i32
    %c8_i32 = arith.constant 8 : i32
    %15 = arith.muli %c0_i32_15, %c8_i32 : i32
    %16 = tpu.assume_multiple %15, 8 : i32
    %17 = arith.index_cast %16 : i32 to index
    %c0_16 = arith.constant 0 : index
    %18 = vector.load %arg11[%17, %c0_16] : memref<64x384xf32, #tpu.memory_space<vmem>>, vector<8x384xf32>
    %cst_17 = arith.constant dense<0.000000e+00> : vector<8x384xf32>
    %19 = tpu.matmul %14, %11, %cst_17 {dimension_numbers = #tpu.dot_dimension_numbers<[1], [0], [0], [1], [0, 0, 1, 1], [], []>} : vector<8x128xbf16>, vector<128x384xbf16>, vector<8x384xf32> -> vector<8x384xf32>
    %20 = vector.extract_strided_slice %18 {offsets = [0, 0], sizes = [8, 128], strides = [1, 1]} : vector<8x384xf32> to vector<8x128xf32>
    %21 = vector.extract_strided_slice %19 {offsets = [0, 0], sizes = [8, 128], strides = [1, 1]} : vector<8x384xf32> to vector<8x128xf32>
    %22 = arith.addf %20, %21 : vector<8x128xf32>
    %23 = arith.negf %22 : vector<8x128xf32>
    %24 = math.exp %23 : vector<8x128xf32>
    %cst_18 = arith.constant 1.000000e+00 : f32
    %25 = vector.broadcast %cst_18 : f32 to vector<8x128xf32>
    %26 = arith.addf %25, %24 : vector<8x128xf32>
    %27 = arith.divf %25, %26 : vector<8x128xf32>
    %28 = vector.extract_strided_slice %18 {offsets = [0, 128], sizes = [8, 128], strides = [1, 1]} : vector<8x384xf32> to vector<8x128xf32>
    %29 = vector.extract_strided_slice %19 {offsets = [0, 128], sizes = [8, 128], strides = [1, 1]} : vector<8x384xf32> to vector<8x128xf32>
    %30 = arith.addf %28, %29 : vector<8x128xf32>
    %31 = arith.negf %30 : vector<8x128xf32>
    %32 = math.exp %31 : vector<8x128xf32>
    %cst_19 = arith.constant 1.000000e+00 : f32
    %33 = vector.broadcast %cst_19 : f32 to vector<8x128xf32>
    %34 = arith.addf %33, %32 : vector<8x128xf32>
    %35 = arith.divf %33, %34 : vector<8x128xf32>
    %36 = vector.extract_strided_slice %18 {offsets = [0, 256], sizes = [8, 128], strides = [1, 1]} : vector<8x384xf32> to vector<8x128xf32>
    %37 = vector.extract_strided_slice %19 {offsets = [0, 256], sizes = [8, 128], strides = [1, 1]} : vector<8x384xf32> to vector<8x128xf32>
    %38 = vector.broadcast %12 : vector<1x128xf32> to vector<8x128xf32>
    %39 = arith.addf %37, %38 : vector<8x128xf32>
    %40 = arith.mulf %27, %39 : vector<8x128xf32>
    %41 = arith.addf %36, %40 : vector<8x128xf32>
    %42 = math.tanh %41 : vector<8x128xf32>
    %cst_20 = arith.constant 1.000000e+00 : f32
    %43 = vector.broadcast %cst_20 : f32 to vector<8x128xf32>
    %44 = arith.subf %43, %35 : vector<8x128xf32>
    %45 = arith.mulf %44, %42 : vector<8x128xf32>
    %46 = arith.mulf %35, %13 : vector<8x128xf32>
    %47 = arith.addf %45, %46 : vector<8x128xf32>
    %48 = arith.truncf %47 : vector<8x128xf32> to vector<8x128xbf16>
    %49 = arith.index_cast %c0_i32_15 : i32 to index
    %c0_21 = arith.constant 0 : index
    %c0_22 = arith.constant 0 : index
    %50 = vector.load %arg8[%49, %c0_21, %c0_22] : memref<8x8x128xbf16, #tpu.memory_space<vmem>>, vector<1x8x128xbf16>
    %51 = vector.shape_cast %50 : vector<1x8x128xbf16> to vector<8x128xbf16>
    %52 = vector.shape_cast %48 : vector<8x128xbf16> to vector<1x8x128xbf16>
    tpu.vector_store %arg8[%49, %c0_21, %c0_22], %52 {strides = array<i32>} : memref<8x8x128xbf16, #tpu.memory_space<vmem>>, vector<1x8x128xbf16>,
    %c1_i32 = arith.constant 1 : i32
    %c8_i32_23 = arith.constant 8 : i32
    %53 = arith.muli %c1_i32, %c8_i32_23 : i32
    %54 = tpu.assume_multiple %53, 8 : i32
    %55 = arith.index_cast %54 : i32 to index
    %c0_24 = arith.constant 0 : index
    %56 = vector.load %arg11[%55, %c0_24] : memref<64x384xf32, #tpu.memory_space<vmem>>, vector<8x384xf32>
    %cst_25 = arith.constant dense<0.000000e+00> : vector<8x384xf32>
    %57 = tpu.matmul %48, %11, %cst_25 {dimension_numbers = #tpu.dot_dimension_numbers<[1], [0], [0], [1], [0, 0, 1, 1], [], []>} : vector<8x128xbf16>, vector<128x384xbf16>, vector<8x384xf32> -> vector<8x384xf32>
    %58 = vector.extract_strided_slice %56 {offsets = [0, 0], sizes = [8, 128], strides = [1, 1]} : vector<8x384xf32> to vector<8x128xf32>
    %59 = vector.extract_strided_slice %57 {offsets = [0, 0], sizes = [8, 128], strides = [1, 1]} : vector<8x384xf32> to vector<8x128xf32>
    %60 = arith.addf %58, %59 : vector<8x128xf32>
    %61 = arith.negf %60 : vector<8x128xf32>
    %62 = math.exp %61 : vector<8x128xf32>
    %cst_26 = arith.constant 1.000000e+00 : f32
    %63 = vector.broadcast %cst_26 : f32 to vector<8x128xf32>
    %64 = arith.addf %63, %62 : vector<8x128xf32>
    %65 = arith.divf %63, %64 : vector<8x128xf32>
    %66 = vector.extract_strided_slice %56 {offsets = [0, 128], sizes = [8, 128], strides = [1, 1]} : vector<8x384xf32> to vector<8x128xf32>
    %67 = vector.extract_strided_slice %57 {offsets = [0, 128], sizes = [8, 128], strides = [1, 1]} : vector<8x384xf32> to vector<8x128xf32>
    %68 = arith.addf %66, %67 : vector<8x128xf32>
    %69 = arith.negf %68 : vector<8x128xf32>
    %70 = math.exp %69 : vector<8x128xf32>
    %cst_27 = arith.constant 1.000000e+00 : f32
    %71 = vector.broadcast %cst_27 : f32 to vector<8x128xf32>
    %72 = arith.addf %71, %70 : vector<8x128xf32>
    %73 = arith.divf %71, %72 : vector<8x128xf32>
    %74 = vector.extract_strided_slice %56 {offsets = [0, 256], sizes = [8, 128], strides = [1, 1]} : vector<8x384xf32> to vector<8x128xf32>
    %75 = vector.extract_strided_slice %57 {offsets = [0, 256], sizes = [8, 128], strides = [1, 1]} : vector<8x384xf32> to vector<8x128xf32>
    %76 = vector.broadcast %12 : vector<1x128xf32> to vector<8x128xf32>
    %77 = arith.addf %75, %76 : vector<8x128xf32>
    %78 = arith.mulf %65, %77 : vector<8x128xf32>
    %79 = arith.addf %74, %78 : vector<8x128xf32>
    %80 = math.tanh %79 : vector<8x128xf32>
    %cst_28 = arith.constant 1.000000e+00 : f32
    %81 = vector.broadcast %cst_28 : f32 to vector<8x128xf32>
    %82 = arith.subf %81, %73 : vector<8x128xf32>
    %83 = arith.mulf %82, %80 : vector<8x128xf32>
    %84 = arith.mulf %73, %47 : vector<8x128xf32>
    %85 = arith.addf %83, %84 : vector<8x128xf32>
    %86 = arith.truncf %85 : vector<8x128xf32> to vector<8x128xbf16>
    %87 = arith.index_cast %c1_i32 : i32 to index
    %c0_29 = arith.constant 0 : index
    %c0_30 = arith.constant 0 : index
    %88 = vector.load %arg8[%87, %c0_29, %c0_30] : memref<8x8x128xbf16, #tpu.memory_space<vmem>>, vector<1x8x128xbf16>
    %89 = vector.shape_cast %88 : vector<1x8x128xbf16> to vector<8x128xbf16>
    %90 = vector.shape_cast %86 : vector<8x128xbf16> to vector<1x8x128xbf16>
    tpu.vector_store %arg8[%87, %c0_29, %c0_30], %90 {strides = array<i32>} : memref<8x8x128xbf16, #tpu.memory_space<vmem>>, vector<1x8x128xbf16>,
    %c2_i32 = arith.constant 2 : i32
    %c8_i32_31 = arith.constant 8 : i32
    %91 = arith.muli %c2_i32, %c8_i32_31 : i32
    %92 = tpu.assume_multiple %91, 8 : i32
    %93 = arith.index_cast %92 : i32 to index
    %c0_32 = arith.constant 0 : index
    %94 = vector.load %arg11[%93, %c0_32] : memref<64x384xf32, #tpu.memory_space<vmem>>, vector<8x384xf32>
    %cst_33 = arith.constant dense<0.000000e+00> : vector<8x384xf32>
    %95 = tpu.matmul %86, %11, %cst_33 {dimension_numbers = #tpu.dot_dimension_numbers<[1], [0], [0], [1], [0, 0, 1, 1], [], []>} : vector<8x128xbf16>, vector<128x384xbf16>, vector<8x384xf32> -> vector<8x384xf32>
    %96 = vector.extract_strided_slice %94 {offsets = [0, 0], sizes = [8, 128], strides = [1, 1]} : vector<8x384xf32> to vector<8x128xf32>
    %97 = vector.extract_strided_slice %95 {offsets = [0, 0], sizes = [8, 128], strides = [1, 1]} : vector<8x384xf32> to vector<8x128xf32>
    %98 = arith.addf %96, %97 : vector<8x128xf32>
    %99 = arith.negf %98 : vector<8x128xf32>
    %100 = math.exp %99 : vector<8x128xf32>
    %cst_34 = arith.constant 1.000000e+00 : f32
    %101 = vector.broadcast %cst_34 : f32 to vector<8x128xf32>
    %102 = arith.addf %101, %100 : vector<8x128xf32>
    %103 = arith.divf %101, %102 : vector<8x128xf32>
    %104 = vector.extract_strided_slice %94 {offsets = [0, 128], sizes = [8, 128], strides = [1, 1]} : vector<8x384xf32> to vector<8x128xf32>
    %105 = vector.extract_strided_slice %95 {offsets = [0, 128], sizes = [8, 128], strides = [1, 1]} : vector<8x384xf32> to vector<8x128xf32>
    %106 = arith.addf %104, %105 : vector<8x128xf32>
    %107 = arith.negf %106 : vector<8x128xf32>
    %108 = math.exp %107 : vector<8x128xf32>
    %cst_35 = arith.constant 1.000000e+00 : f32
    %109 = vector.broadcast %cst_35 : f32 to vector<8x128xf32>
    %110 = arith.addf %109, %108 : vector<8x128xf32>
    %111 = arith.divf %109, %110 : vector<8x128xf32>
    %112 = vector.extract_strided_slice %94 {offsets = [0, 256], sizes = [8, 128], strides = [1, 1]} : vector<8x384xf32> to vector<8x128xf32>
    %113 = vector.extract_strided_slice %95 {offsets = [0, 256], sizes = [8, 128], strides = [1, 1]} : vector<8x384xf32> to vector<8x128xf32>
    %114 = vector.broadcast %12 : vector<1x128xf32> to vector<8x128xf32>
    %115 = arith.addf %113, %114 : vector<8x128xf32>
    %116 = arith.mulf %103, %115 : vector<8x128xf32>
    %117 = arith.addf %112, %116 : vector<8x128xf32>
    %118 = math.tanh %117 : vector<8x128xf32>
    %cst_36 = arith.constant 1.000000e+00 : f32
    %119 = vector.broadcast %cst_36 : f32 to vector<8x128xf32>
    %120 = arith.subf %119, %111 : vector<8x128xf32>
    %121 = arith.mulf %120, %118 : vector<8x128xf32>
    %122 = arith.mulf %111, %85 : vector<8x128xf32>
    %123 = arith.addf %121, %122 : vector<8x128xf32>
    %124 = arith.truncf %123 : vector<8x128xf32> to vector<8x128xbf16>
    %125 = arith.index_cast %c2_i32 : i32 to index
    %c0_37 = arith.constant 0 : index
    %c0_38 = arith.constant 0 : index
    %126 = vector.load %arg8[%125, %c0_37, %c0_38] : memref<8x8x128xbf16, #tpu.memory_space<vmem>>, vector<1x8x128xbf16>
    %127 = vector.shape_cast %126 : vector<1x8x128xbf16> to vector<8x128xbf16>
    %128 = vector.shape_cast %124 : vector<8x128xbf16> to vector<1x8x128xbf16>
    tpu.vector_store %arg8[%125, %c0_37, %c0_38], %128 {strides = array<i32>} : memref<8x8x128xbf16, #tpu.memory_space<vmem>>, vector<1x8x128xbf16>,
    %c3_i32 = arith.constant 3 : i32
    %c8_i32_39 = arith.constant 8 : i32
    %129 = arith.muli %c3_i32, %c8_i32_39 : i32
    %130 = tpu.assume_multiple %129, 8 : i32
    %131 = arith.index_cast %130 : i32 to index
    %c0_40 = arith.constant 0 : index
    %132 = vector.load %arg11[%131, %c0_40] : memref<64x384xf32, #tpu.memory_space<vmem>>, vector<8x384xf32>
    %cst_41 = arith.constant dense<0.000000e+00> : vector<8x384xf32>
    %133 = tpu.matmul %124, %11, %cst_41 {dimension_numbers = #tpu.dot_dimension_numbers<[1], [0], [0], [1], [0, 0, 1, 1], [], []>} : vector<8x128xbf16>, vector<128x384xbf16>, vector<8x384xf32> -> vector<8x384xf32>
    %134 = vector.extract_strided_slice %132 {offsets = [0, 0], sizes = [8, 128], strides = [1, 1]} : vector<8x384xf32> to vector<8x128xf32>
    %135 = vector.extract_strided_slice %133 {offsets = [0, 0], sizes = [8, 128], strides = [1, 1]} : vector<8x384xf32> to vector<8x128xf32>
    %136 = arith.addf %134, %135 : vector<8x128xf32>
    %137 = arith.negf %136 : vector<8x128xf32>
    %138 = math.exp %137 : vector<8x128xf32>
    %cst_42 = arith.constant 1.000000e+00 : f32
    %139 = vector.broadcast %cst_42 : f32 to vector<8x128xf32>
    %140 = arith.addf %139, %138 : vector<8x128xf32>
    %141 = arith.divf %139, %140 : vector<8x128xf32>
    %142 = vector.extract_strided_slice %132 {offsets = [0, 128], sizes = [8, 128], strides = [1, 1]} : vector<8x384xf32> to vector<8x128xf32>
    %143 = vector.extract_strided_slice %133 {offsets = [0, 128], sizes = [8, 128], strides = [1, 1]} : vector<8x384xf32> to vector<8x128xf32>
    %144 = arith.addf %142, %143 : vector<8x128xf32>
    %145 = arith.negf %144 : vector<8x128xf32>
    %146 = math.exp %145 : vector<8x128xf32>
    %cst_43 = arith.constant 1.000000e+00 : f32
    %147 = vector.broadcast %cst_43 : f32 to vector<8x128xf32>
    %148 = arith.addf %147, %146 : vector<8x128xf32>
    %149 = arith.divf %147, %148 : vector<8x128xf32>
    %150 = vector.extract_strided_slice %132 {offsets = [0, 256], sizes = [8, 128], strides = [1, 1]} : vector<8x384xf32> to vector<8x128xf32>
    %151 = vector.extract_strided_slice %133 {offsets = [0, 256], sizes = [8, 128], strides = [1, 1]} : vector<8x384xf32> to vector<8x128xf32>
    %152 = vector.broadcast %12 : vector<1x128xf32> to vector<8x128xf32>
    %153 = arith.addf %151, %152 : vector<8x128xf32>
    %154 = arith.mulf %141, %153 : vector<8x128xf32>
    %155 = arith.addf %150, %154 : vector<8x128xf32>
    %156 = math.tanh %155 : vector<8x128xf32>
    %cst_44 = arith.constant 1.000000e+00 : f32
    %157 = vector.broadcast %cst_44 : f32 to vector<8x128xf32>
    %158 = arith.subf %157, %149 : vector<8x128xf32>
    %159 = arith.mulf %158, %156 : vector<8x128xf32>
    %160 = arith.mulf %149, %123 : vector<8x128xf32>
    %161 = arith.addf %159, %160 : vector<8x128xf32>
    %162 = arith.truncf %161 : vector<8x128xf32> to vector<8x128xbf16>
    %163 = arith.index_cast %c3_i32 : i32 to index
    %c0_45 = arith.constant 0 : index
    %c0_46 = arith.constant 0 : index
    %164 = vector.load %arg8[%163, %c0_45, %c0_46] : memref<8x8x128xbf16, #tpu.memory_space<vmem>>, vector<1x8x128xbf16>
    %165 = vector.shape_cast %164 : vector<1x8x128xbf16> to vector<8x128xbf16>
    %166 = vector.shape_cast %162 : vector<8x128xbf16> to vector<1x8x128xbf16>
    tpu.vector_store %arg8[%163, %c0_45, %c0_46], %166 {strides = array<i32>} : memref<8x8x128xbf16, #tpu.memory_space<vmem>>, vector<1x8x128xbf16>,
    %c4_i32 = arith.constant 4 : i32
    %c8_i32_47 = arith.constant 8 : i32
    %167 = arith.muli %c4_i32, %c8_i32_47 : i32
    %168 = tpu.assume_multiple %167, 8 : i32
    %169 = arith.index_cast %168 : i32 to index
    %c0_48 = arith.constant 0 : index
    %170 = vector.load %arg11[%169, %c0_48] : memref<64x384xf32, #tpu.memory_space<vmem>>, vector<8x384xf32>
    %cst_49 = arith.constant dense<0.000000e+00> : vector<8x384xf32>
    %171 = tpu.matmul %162, %11, %cst_49 {dimension_numbers = #tpu.dot_dimension_numbers<[1], [0], [0], [1], [0, 0, 1, 1], [], []>} : vector<8x128xbf16>, vector<128x384xbf16>, vector<8x384xf32> -> vector<8x384xf32>
    %172 = vector.extract_strided_slice %170 {offsets = [0, 0], sizes = [8, 128], strides = [1, 1]} : vector<8x384xf32> to vector<8x128xf32>
    %173 = vector.extract_strided_slice %171 {offsets = [0, 0], sizes = [8, 128], strides = [1, 1]} : vector<8x384xf32> to vector<8x128xf32>
    %174 = arith.addf %172, %173 : vector<8x128xf32>
    %175 = arith.negf %174 : vector<8x128xf32>
    %176 = math.exp %175 : vector<8x128xf32>
    %cst_50 = arith.constant 1.000000e+00 : f32
    %177 = vector.broadcast %cst_50 : f32 to vector<8x128xf32>
    %178 = arith.addf %177, %176 : vector<8x128xf32>
    %179 = arith.divf %177, %178 : vector<8x128xf32>
    %180 = vector.extract_strided_slice %170 {offsets = [0, 128], sizes = [8, 128], strides = [1, 1]} : vector<8x384xf32> to vector<8x128xf32>
    %181 = vector.extract_strided_slice %171 {offsets = [0, 128], sizes = [8, 128], strides = [1, 1]} : vector<8x384xf32> to vector<8x128xf32>
    %182 = arith.addf %180, %181 : vector<8x128xf32>
    %183 = arith.negf %182 : vector<8x128xf32>
    %184 = math.exp %183 : vector<8x128xf32>
    %cst_51 = arith.constant 1.000000e+00 : f32
    %185 = vector.broadcast %cst_51 : f32 to vector<8x128xf32>
    %186 = arith.addf %185, %184 : vector<8x128xf32>
    %187 = arith.divf %185, %186 : vector<8x128xf32>
    %188 = vector.extract_strided_slice %170 {offsets = [0, 256], sizes = [8, 128], strides = [1, 1]} : vector<8x384xf32> to vector<8x128xf32>
    %189 = vector.extract_strided_slice %171 {offsets = [0, 256], sizes = [8, 128], strides = [1, 1]} : vector<8x384xf32> to vector<8x128xf32>
    %190 = vector.broadcast %12 : vector<1x128xf32> to vector<8x128xf32>
    %191 = arith.addf %189, %190 : vector<8x128xf32>
    %192 = arith.mulf %179, %191 : vector<8x128xf32>
    %193 = arith.addf %188, %192 : vector<8x128xf32>
    %194 = math.tanh %193 : vector<8x128xf32>
    %cst_52 = arith.constant 1.000000e+00 : f32
    %195 = vector.broadcast %cst_52 : f32 to vector<8x128xf32>
    %196 = arith.subf %195, %187 : vector<8x128xf32>
    %197 = arith.mulf %196, %194 : vector<8x128xf32>
    %198 = arith.mulf %187, %161 : vector<8x128xf32>
    %199 = arith.addf %197, %198 : vector<8x128xf32>
    %200 = arith.truncf %199 : vector<8x128xf32> to vector<8x128xbf16>
    %201 = arith.index_cast %c4_i32 : i32 to index
    %c0_53 = arith.constant 0 : index
    %c0_54 = arith.constant 0 : index
    %202 = vector.load %arg8[%201, %c0_53, %c0_54] : memref<8x8x128xbf16, #tpu.memory_space<vmem>>, vector<1x8x128xbf16>
    %203 = vector.shape_cast %202 : vector<1x8x128xbf16> to vector<8x128xbf16>
    %204 = vector.shape_cast %200 : vector<8x128xbf16> to vector<1x8x128xbf16>
    tpu.vector_store %arg8[%201, %c0_53, %c0_54], %204 {strides = array<i32>} : memref<8x8x128xbf16, #tpu.memory_space<vmem>>, vector<1x8x128xbf16>,
    %c5_i32 = arith.constant 5 : i32
    %c8_i32_55 = arith.constant 8 : i32
    %205 = arith.muli %c5_i32, %c8_i32_55 : i32
    %206 = tpu.assume_multiple %205, 8 : i32
    %207 = arith.index_cast %206 : i32 to index
    %c0_56 = arith.constant 0 : index
    %208 = vector.load %arg11[%207, %c0_56] : memref<64x384xf32, #tpu.memory_space<vmem>>, vector<8x384xf32>
    %cst_57 = arith.constant dense<0.000000e+00> : vector<8x384xf32>
    %209 = tpu.matmul %200, %11, %cst_57 {dimension_numbers = #tpu.dot_dimension_numbers<[1], [0], [0], [1], [0, 0, 1, 1], [], []>} : vector<8x128xbf16>, vector<128x384xbf16>, vector<8x384xf32> -> vector<8x384xf32>
    %210 = vector.extract_strided_slice %208 {offsets = [0, 0], sizes = [8, 128], strides = [1, 1]} : vector<8x384xf32> to vector<8x128xf32>
    %211 = vector.extract_strided_slice %209 {offsets = [0, 0], sizes = [8, 128], strides = [1, 1]} : vector<8x384xf32> to vector<8x128xf32>
    %212 = arith.addf %210, %211 : vector<8x128xf32>
    %213 = arith.negf %212 : vector<8x128xf32>
    %214 = math.exp %213 : vector<8x128xf32>
    %cst_58 = arith.constant 1.000000e+00 : f32
    %215 = vector.broadcast %cst_58 : f32 to vector<8x128xf32>
    %216 = arith.addf %215, %214 : vector<8x128xf32>
    %217 = arith.divf %215, %216 : vector<8x128xf32>
    %218 = vector.extract_strided_slice %208 {offsets = [0, 128], sizes = [8, 128], strides = [1, 1]} : vector<8x384xf32> to vector<8x128xf32>
    %219 = vector.extract_strided_slice %209 {offsets = [0, 128], sizes = [8, 128], strides = [1, 1]} : vector<8x384xf32> to vector<8x128xf32>
    %220 = arith.addf %218, %219 : vector<8x128xf32>
    %221 = arith.negf %220 : vector<8x128xf32>
    %222 = math.exp %221 : vector<8x128xf32>
    %cst_59 = arith.constant 1.000000e+00 : f32
    %223 = vector.broadcast %cst_59 : f32 to vector<8x128xf32>
    %224 = arith.addf %223, %222 : vector<8x128xf32>
    %225 = arith.divf %223, %224 : vector<8x128xf32>
    %226 = vector.extract_strided_slice %208 {offsets = [0, 256], sizes = [8, 128], strides = [1, 1]} : vector<8x384xf32> to vector<8x128xf32>
    %227 = vector.extract_strided_slice %209 {offsets = [0, 256], sizes = [8, 128], strides = [1, 1]} : vector<8x384xf32> to vector<8x128xf32>
    %228 = vector.broadcast %12 : vector<1x128xf32> to vector<8x128xf32>
    %229 = arith.addf %227, %228 : vector<8x128xf32>
    %230 = arith.mulf %217, %229 : vector<8x128xf32>
    %231 = arith.addf %226, %230 : vector<8x128xf32>
    %232 = math.tanh %231 : vector<8x128xf32>
    %cst_60 = arith.constant 1.000000e+00 : f32
    %233 = vector.broadcast %cst_60 : f32 to vector<8x128xf32>
    %234 = arith.subf %233, %225 : vector<8x128xf32>
    %235 = arith.mulf %234, %232 : vector<8x128xf32>
    %236 = arith.mulf %225, %199 : vector<8x128xf32>
    %237 = arith.addf %235, %236 : vector<8x128xf32>
    %238 = arith.truncf %237 : vector<8x128xf32> to vector<8x128xbf16>
    %239 = arith.index_cast %c5_i32 : i32 to index
    %c0_61 = arith.constant 0 : index
    %c0_62 = arith.constant 0 : index
    %240 = vector.load %arg8[%239, %c0_61, %c0_62] : memref<8x8x128xbf16, #tpu.memory_space<vmem>>, vector<1x8x128xbf16>
    %241 = vector.shape_cast %240 : vector<1x8x128xbf16> to vector<8x128xbf16>
    %242 = vector.shape_cast %238 : vector<8x128xbf16> to vector<1x8x128xbf16>
    tpu.vector_store %arg8[%239, %c0_61, %c0_62], %242 {strides = array<i32>} : memref<8x8x128xbf16, #tpu.memory_space<vmem>>, vector<1x8x128xbf16>,
    %c6_i32 = arith.constant 6 : i32
    %c8_i32_63 = arith.constant 8 : i32
    %243 = arith.muli %c6_i32, %c8_i32_63 : i32
    %244 = tpu.assume_multiple %243, 8 : i32
    %245 = arith.index_cast %244 : i32 to index
    %c0_64 = arith.constant 0 : index
    %246 = vector.load %arg11[%245, %c0_64] : memref<64x384xf32, #tpu.memory_space<vmem>>, vector<8x384xf32>
    %cst_65 = arith.constant dense<0.000000e+00> : vector<8x384xf32>
    %247 = tpu.matmul %238, %11, %cst_65 {dimension_numbers = #tpu.dot_dimension_numbers<[1], [0], [0], [1], [0, 0, 1, 1], [], []>} : vector<8x128xbf16>, vector<128x384xbf16>, vector<8x384xf32> -> vector<8x384xf32>
    %248 = vector.extract_strided_slice %246 {offsets = [0, 0], sizes = [8, 128], strides = [1, 1]} : vector<8x384xf32> to vector<8x128xf32>
    %249 = vector.extract_strided_slice %247 {offsets = [0, 0], sizes = [8, 128], strides = [1, 1]} : vector<8x384xf32> to vector<8x128xf32>
    %250 = arith.addf %248, %249 : vector<8x128xf32>
    %251 = arith.negf %250 : vector<8x128xf32>
    %252 = math.exp %251 : vector<8x128xf32>
    %cst_66 = arith.constant 1.000000e+00 : f32
    %253 = vector.broadcast %cst_66 : f32 to vector<8x128xf32>
    %254 = arith.addf %253, %252 : vector<8x128xf32>
    %255 = arith.divf %253, %254 : vector<8x128xf32>
    %256 = vector.extract_strided_slice %246 {offsets = [0, 128], sizes = [8, 128], strides = [1, 1]} : vector<8x384xf32> to vector<8x128xf32>
    %257 = vector.extract_strided_slice %247 {offsets = [0, 128], sizes = [8, 128], strides = [1, 1]} : vector<8x384xf32> to vector<8x128xf32>
    %258 = arith.addf %256, %257 : vector<8x128xf32>
    %259 = arith.negf %258 : vector<8x128xf32>
    %260 = math.exp %259 : vector<8x128xf32>
    %cst_67 = arith.constant 1.000000e+00 : f32
    %261 = vector.broadcast %cst_67 : f32 to vector<8x128xf32>
    %262 = arith.addf %261, %260 : vector<8x128xf32>
    %263 = arith.divf %261, %262 : vector<8x128xf32>
    %264 = vector.extract_strided_slice %246 {offsets = [0, 256], sizes = [8, 128], strides = [1, 1]} : vector<8x384xf32> to vector<8x128xf32>
    %265 = vector.extract_strided_slice %247 {offsets = [0, 256], sizes = [8, 128], strides = [1, 1]} : vector<8x384xf32> to vector<8x128xf32>
    %266 = vector.broadcast %12 : vector<1x128xf32> to vector<8x128xf32>
    %267 = arith.addf %265, %266 : vector<8x128xf32>
    %268 = arith.mulf %255, %267 : vector<8x128xf32>
    %269 = arith.addf %264, %268 : vector<8x128xf32>
    %270 = math.tanh %269 : vector<8x128xf32>
    %cst_68 = arith.constant 1.000000e+00 : f32
    %271 = vector.broadcast %cst_68 : f32 to vector<8x128xf32>
    %272 = arith.subf %271, %263 : vector<8x128xf32>
    %273 = arith.mulf %272, %270 : vector<8x128xf32>
    %274 = arith.mulf %263, %237 : vector<8x128xf32>
    %275 = arith.addf %273, %274 : vector<8x128xf32>
    %276 = arith.truncf %275 : vector<8x128xf32> to vector<8x128xbf16>
    %277 = arith.index_cast %c6_i32 : i32 to index
    %c0_69 = arith.constant 0 : index
    %c0_70 = arith.constant 0 : index
    %278 = vector.load %arg8[%277, %c0_69, %c0_70] : memref<8x8x128xbf16, #tpu.memory_space<vmem>>, vector<1x8x128xbf16>
    %279 = vector.shape_cast %278 : vector<1x8x128xbf16> to vector<8x128xbf16>
    %280 = vector.shape_cast %276 : vector<8x128xbf16> to vector<1x8x128xbf16>
    tpu.vector_store %arg8[%277, %c0_69, %c0_70], %280 {strides = array<i32>} : memref<8x8x128xbf16, #tpu.memory_space<vmem>>, vector<1x8x128xbf16>,
    %c7_i32 = arith.constant 7 : i32
    %c8_i32_71 = arith.constant 8 : i32
    %281 = arith.muli %c7_i32, %c8_i32_71 : i32
    %282 = tpu.assume_multiple %281, 8 : i32
    %283 = arith.index_cast %282 : i32 to index
    %c0_72 = arith.constant 0 : index
    %284 = vector.load %arg11[%283, %c0_72] : memref<64x384xf32, #tpu.memory_space<vmem>>, vector<8x384xf32>
    %cst_73 = arith.constant dense<0.000000e+00> : vector<8x384xf32>
    %285 = tpu.matmul %276, %11, %cst_73 {dimension_numbers = #tpu.dot_dimension_numbers<[1], [0], [0], [1], [0, 0, 1, 1], [], []>} : vector<8x128xbf16>, vector<128x384xbf16>, vector<8x384xf32> -> vector<8x384xf32>
    %286 = vector.extract_strided_slice %284 {offsets = [0, 0], sizes = [8, 128], strides = [1, 1]} : vector<8x384xf32> to vector<8x128xf32>
    %287 = vector.extract_strided_slice %285 {offsets = [0, 0], sizes = [8, 128], strides = [1, 1]} : vector<8x384xf32> to vector<8x128xf32>
    %288 = arith.addf %286, %287 : vector<8x128xf32>
    %289 = arith.negf %288 : vector<8x128xf32>
    %290 = math.exp %289 : vector<8x128xf32>
    %cst_74 = arith.constant 1.000000e+00 : f32
    %291 = vector.broadcast %cst_74 : f32 to vector<8x128xf32>
    %292 = arith.addf %291, %290 : vector<8x128xf32>
    %293 = arith.divf %291, %292 : vector<8x128xf32>
    %294 = vector.extract_strided_slice %284 {offsets = [0, 128], sizes = [8, 128], strides = [1, 1]} : vector<8x384xf32> to vector<8x128xf32>
    %295 = vector.extract_strided_slice %285 {offsets = [0, 128], sizes = [8, 128], strides = [1, 1]} : vector<8x384xf32> to vector<8x128xf32>
    %296 = arith.addf %294, %295 : vector<8x128xf32>
    %297 = arith.negf %296 : vector<8x128xf32>
    %298 = math.exp %297 : vector<8x128xf32>
    %cst_75 = arith.constant 1.000000e+00 : f32
    %299 = vector.broadcast %cst_75 : f32 to vector<8x128xf32>
    %300 = arith.addf %299, %298 : vector<8x128xf32>
    %301 = arith.divf %299, %300 : vector<8x128xf32>
    %302 = vector.extract_strided_slice %284 {offsets = [0, 256], sizes = [8, 128], strides = [1, 1]} : vector<8x384xf32> to vector<8x128xf32>
    %303 = vector.extract_strided_slice %285 {offsets = [0, 256], sizes = [8, 128], strides = [1, 1]} : vector<8x384xf32> to vector<8x128xf32>
    %304 = vector.broadcast %12 : vector<1x128xf32> to vector<8x128xf32>
    %305 = arith.addf %303, %304 : vector<8x128xf32>
    %306 = arith.mulf %293, %305 : vector<8x128xf32>
    %307 = arith.addf %302, %306 : vector<8x128xf32>
    %308 = math.tanh %307 : vector<8x128xf32>
    %cst_76 = arith.constant 1.000000e+00 : f32
    %309 = vector.broadcast %cst_76 : f32 to vector<8x128xf32>
    %310 = arith.subf %309, %301 : vector<8x128xf32>
    %311 = arith.mulf %310, %308 : vector<8x128xf32>
    %312 = arith.mulf %301, %275 : vector<8x128xf32>
    %313 = arith.addf %311, %312 : vector<8x128xf32>
    %314 = arith.truncf %313 : vector<8x128xf32> to vector<8x128xbf16>
    %315 = arith.index_cast %c7_i32 : i32 to index
    %c0_77 = arith.constant 0 : index
    %c0_78 = arith.constant 0 : index
    %316 = vector.load %arg8[%315, %c0_77, %c0_78] : memref<8x8x128xbf16, #tpu.memory_space<vmem>>, vector<1x8x128xbf16>
    %317 = vector.shape_cast %316 : vector<1x8x128xbf16> to vector<8x128xbf16>
    %318 = vector.shape_cast %314 : vector<8x128xbf16> to vector<1x8x128xbf16>
    tpu.vector_store %arg8[%315, %c0_77, %c0_78], %318 {strides = array<i32>} : memref<8x8x128xbf16, #tpu.memory_space<vmem>>, vector<1x8x128xbf16>,
    %c8_i32_79 = arith.constant 8 : i32
    %c0_80 = arith.constant 0 : index
    %c0_81 = arith.constant 0 : index
    %319 = vector.load %arg10[%c0_80, %c0_81] : memref<8x128xf32, #tpu.memory_space<vmem>>, vector<8x128xf32>
    tpu.vector_store %arg10[%c0_80, %c0_81], %313 {strides = array<i32>} : memref<8x128xf32, #tpu.memory_space<vmem>>, vector<8x128xf32>,
    %c0_82 = arith.constant 0 : index
    %c0_83 = arith.constant 0 : index
    %320 = vector.load %arg9[%c0_82, %c0_83] : memref<8x128xf32, #tpu.memory_space<vmem>>, vector<8x128xf32>
    tpu.vector_store %arg9[%c0_82, %c0_83], %313 {strides = array<i32>} : memref<8x128xf32, #tpu.memory_space<vmem>>, vector<8x128xf32>,
    return
  }
  func.func @transform_0(%arg0: i32, %arg1: i32) -> (i32, i32, i32) {
    %c0_i32 = arith.constant 0 : i32
    %c0_i32_0 = arith.constant 0 : i32
    return %arg1, %arg0, %c0_i32 : i32, i32, i32
  }
  func.func @transform_1(%arg0: i32, %arg1: i32) -> (i32, i32) {
    %c0_i32 = arith.constant 0 : i32
    %c0_i32_0 = arith.constant 0 : i32
    %c0_i32_1 = arith.constant 0 : i32
    return %c0_i32, %c0_i32_0 : i32, i32
  }
  func.func @transform_2(%arg0: i32, %arg1: i32) -> (i32, i32) {
    %c0_i32 = arith.constant 0 : i32
    %c0_i32_0 = arith.constant 0 : i32
    %c0_i32_1 = arith.constant 0 : i32
    return %c0_i32, %c0_i32_0 : i32, i32
  }
  func.func @transform_3(%arg0: i32, %arg1: i32) -> (i32, i32) {
    %c0_i32 = arith.constant 0 : i32
    %c0_i32_0 = arith.constant 0 : i32
    %c0_i32_1 = arith.constant 0 : i32
    return %c0_i32, %c0_i32_0 : i32, i32
  }
  func.func @transform_4(%arg0: i32, %arg1: i32) -> (i32, i32) {
    %c0_i32 = arith.constant 0 : i32
    %c0_i32_0 = arith.constant 0 : i32
    %c0_i32_1 = arith.constant 0 : i32
    return %c0_i32, %c0_i32_0 : i32, i32
  }
  func.func @transform_5(%arg0: i32, %arg1: i32) -> (i32, i32) {
    %c0_i32 = arith.constant 0 : i32
    %c0_i32_0 = arith.constant 0 : i32
    return %arg0, %c0_i32 : i32, i32
  }
  func.func @transform_6(%arg0: i32, %arg1: i32) -> (i32, i32, i32) {
    %c0_i32 = arith.constant 0 : i32
    %c0_i32_0 = arith.constant 0 : i32
    return %arg1, %arg0, %c0_i32 : i32, i32, i32
  }
  func.func @transform_7(%arg0: i32, %arg1: i32) -> (i32, i32) {
    %c0_i32 = arith.constant 0 : i32
    %c0_i32_0 = arith.constant 0 : i32
    return %arg0, %c0_i32 : i32, i32
  }
}

module attributes {stable_mosaic.version = 11 : i64} {
  func.func @_head_kernel(%arg0: i32, %arg1: memref<16x128xbf16, #tpu.memory_space<vmem>>, %arg2: memref<128x256xbf16, #tpu.memory_space<vmem>>, %arg3: memref<1x256xf32, #tpu.memory_space<vmem>>, %arg4: memref<16x256xf32, #tpu.memory_space<vmem>>) attributes {dimension_semantics = [#tpu.dimension_semantics<parallel>], iteration_bounds = array<i64: 1>, scalar_prefetch = 0 : i64, scratch_operands = 0 : i64, tpu.core_type = #tpu.core_type<tc>, window_params = [{transform_indices = @transform_0, window_bounds = array<i64: 16, 128>}, {pipeline_mode = #tpu.pipeline_mode<synchronous>, transform_indices = @transform_1, window_bounds = array<i64: 128, 256>}, {pipeline_mode = #tpu.pipeline_mode<synchronous>, transform_indices = @transform_2, window_bounds = array<i64: 1, 256>}, {transform_indices = @transform_3, window_bounds = array<i64: 16, 256>}]} {
    %c0 = arith.constant 0 : index
    %c0_0 = arith.constant 0 : index
    %0 = vector.load %arg1[%c0, %c0_0] : memref<16x128xbf16, #tpu.memory_space<vmem>>, vector<16x128xbf16>
    %c0_1 = arith.constant 0 : index
    %c0_2 = arith.constant 0 : index
    %1 = vector.load %arg2[%c0_1, %c0_2] : memref<128x256xbf16, #tpu.memory_space<vmem>>, vector<128x256xbf16>
    %cst = arith.constant dense<0.000000e+00> : vector<16x256xf32>
    %2 = tpu.matmul %0, %1, %cst {dimension_numbers = #tpu.dot_dimension_numbers<[1], [0], [0], [1], [0, 0, 1, 1], [], []>} : vector<16x128xbf16>, vector<128x256xbf16>, vector<16x256xf32> -> vector<16x256xf32>
    %c0_3 = arith.constant 0 : index
    %c0_4 = arith.constant 0 : index
    %3 = vector.load %arg3[%c0_3, %c0_4] : memref<1x256xf32, #tpu.memory_space<vmem>>, vector<1x256xf32>
    %4 = vector.broadcast %3 : vector<1x256xf32> to vector<16x256xf32>
    %5 = arith.addf %2, %4 : vector<16x256xf32>
    %cst_5 = arith.constant dense<0xFF800000> : vector<16xf32>
    %6 = vector.multi_reduction <maximumf>, %5, %cst_5 [1] : vector<16x256xf32> to vector<16xf32>
    %7 = vector.shape_cast %6 : vector<16xf32> to vector<16x1xf32>
    %8 = vector.broadcast %7 : vector<16x1xf32> to vector<16x256xf32>
    %9 = arith.subf %5, %8 : vector<16x256xf32>
    %10 = math.exp %9 : vector<16x256xf32>
    %cst_6 = arith.constant dense<0.000000e+00> : vector<16xf32>
    %11 = vector.multi_reduction <add>, %10, %cst_6 [1] : vector<16x256xf32> to vector<16xf32>
    %12 = vector.shape_cast %11 : vector<16xf32> to vector<16x1xf32>
    %13 = math.log %12 : vector<16x1xf32>
    %14 = vector.broadcast %13 : vector<16x1xf32> to vector<16x256xf32>
    %15 = arith.subf %9, %14 : vector<16x256xf32>
    %c0_7 = arith.constant 0 : index
    %c0_8 = arith.constant 0 : index
    %16 = vector.load %arg4[%c0_7, %c0_8] : memref<16x256xf32, #tpu.memory_space<vmem>>, vector<16x256xf32>
    tpu.vector_store %arg4[%c0_7, %c0_8], %15 {strides = array<i32>} : memref<16x256xf32, #tpu.memory_space<vmem>>, vector<16x256xf32>,
    return
  }
  func.func @transform_0(%arg0: i32) -> (i32, i32) {
    %c0_i32 = arith.constant 0 : i32
    %c0_i32_0 = arith.constant 0 : i32
    return %arg0, %c0_i32 : i32, i32
  }
  func.func @transform_1(%arg0: i32) -> (i32, i32) {
    %c0_i32 = arith.constant 0 : i32
    %c0_i32_0 = arith.constant 0 : i32
    %c0_i32_1 = arith.constant 0 : i32
    return %c0_i32, %c0_i32_0 : i32, i32
  }
  func.func @transform_2(%arg0: i32) -> (i32, i32) {
    %c0_i32 = arith.constant 0 : i32
    %c0_i32_0 = arith.constant 0 : i32
    %c0_i32_1 = arith.constant 0 : i32
    return %c0_i32, %c0_i32_0 : i32, i32
  }
  func.func @transform_3(%arg0: i32) -> (i32, i32) {
    %c0_i32 = arith.constant 0 : i32
    %c0_i32_0 = arith.constant 0 : i32
    return %arg0, %c0_i32 : i32, i32
  }
}

</mosaic_0001>

<llo_original>
// kernel: gru_model_forward.3
$region0: #{gru_model_forward.3}
  #allocation0 [shape = 'u32[]', space=smem, size = 0x4, offset = 0x4, fixed_abs, tag = 'smem constant byte address 0x4 - core index']
  #allocation1 [shape = 'u32[72,128]{1,0:T(1,128)}', space=vmem, size = 0x9000, scoped, tag = 'internal scratch']
  %s0 = inlined_call_operand.vmem [shape: bf16[16,128], index: 0, kind: input, shape index: {}]
  %s1 = inlined_call_operand.hbm [shape: bf16[128,256], index: 1, kind: input, shape index: {}]
  %s2 = inlined_call_operand.vmem [shape: f32[1,256], index: 2, kind: input, shape index: {}]
  %s3 = inlined_call_operand.hbm [shape: f32[16,256], index: 3, kind: output, shape index: {}]
  %s4 = sld [smem:[#allocation0]]
  $region26: #{gru_model_forward.3} parent=0
    _
  %s6 = ssub.s32 1, %s4
  %s7 = scalar_select 0, %s6, %s4
  $region1: #{gru_model_forward.3} parent=0
    #allocation2 [shape = 'u8[65536]{0}', space=vmem, size = 0x10000, scoped, tag = 'input window, operand 1, single buffered']
    #allocation3 [shape = 's32[1]{0}', space=sflag, size = 0x4, scoped, tag = 'scoped memory for gru_model_forward.3']
    #allocation4 [shape = 's32[1]{0}', space=sflag, size = 0x4, scoped, tag = 'scoped memory for gru_model_forward.3']
    #allocation5 [shape = 'u8[16384]{0}', space=vmem, size = 0x4000, scoped, tag = 'output window, operand 0, single buffered']
    %8 = vsyncpa [#allocation3], 0
    %9 = vsyncpa [#allocation4], 0
    // Predicated region
    $region2: #{gru_model_forward.3} parent=1 // pred_check
      _
    $region3: #{gru_model_forward.3} parent=1 // pred_check_branch
      %11 = sbr.rel (0) target = $region5
    $region4: #{gru_model_forward.3} parent=1 // pred_region
      _
    $region5: #{gru_model_forward.3} parent=1 // pred_fallthru
      _
    // Predicated region
    $region6: #{gru_model_forward.3} parent=1 // pred_check
      _
    $region7: #{gru_model_forward.3} parent=1 // pred_check_branch
      %13 = sbr.rel (0) target = $region9
    $region8: #{gru_model_forward.3} parent=1 // pred_region
      %15 = vsyncadd [#allocation3], 0
      %s16 = sshll.u32 %s1, 4
      %s17 = int_to_ptr.hbm [resolvable:$true] %s16
      %s18 = sshll.u32 [#allocation2], 4
      %s19 = int_to_ptr.vmem [resolvable:$true] %s18
      %24 = dma.hbm_to_vmem [thread:$0]  %s17, 2048, %s19, [#allocation3], 128, 128, 8
    $region9: #{gru_model_forward.3} parent=1 // pred_fallthru
      _
    // Predicated region
    $region10: #{gru_model_forward.3} parent=1 // pred_check
      _
    $region11: #{gru_model_forward.3} parent=1 // pred_check_branch
      %26 = sbr.rel (0) target = $region13
    $region12: #{gru_model_forward.3} parent=1 // pred_region
      _
    $region13: #{gru_model_forward.3} parent=1 // pred_fallthru
      _
    // Predicated region
    $region14: #{gru_model_forward.3} parent=1 // pred_check
      _
    $region15: #{gru_model_forward.3} parent=1 // pred_check_branch
      %28 = sbr.rel (0) target = $region17
    $region16: #{gru_model_forward.3} parent=1 // pred_region
      %30 = dma.done [#allocation3], 2048
    $region17: #{gru_model_forward.3} parent=1 // pred_fallthru
      _
    %v31 = vld [vmem:[%s0] sm:$0xf]
    %v32 = vld [vmem:[%s0 + $0x4] sm:$0xf]
    %v33 = vld [vmem:[#allocation2] sm:$0xff]
    %v34 = vld [vmem:[#allocation2 + $0x8] sm:$0xff]
    %v35 = vld [vmem:[#allocation2 + $0x10] sm:$0xff]
    %v36 = vld [vmem:[#allocation2 + $0x18] sm:$0xff]
    %v37 = vld [vmem:[#allocation2 + $0x20] sm:$0xff]
    %v38 = vld [vmem:[#allocation2 + $0x28] sm:$0xff]
    %v39 = vld [vmem:[#allocation2 + $0x30] sm:$0xff]
    %v40 = vld [vmem:[#allocation2 + $0x38] sm:$0xff]
    %v41 = vld [vmem:[#allocation2 + $0x40] sm:$0xff]
    %v42 = vld [vmem:[#allocation2 + $0x48] sm:$0xff]
    %v43 = vld [vmem:[#allocation2 + $0x50] sm:$0xff]
    %v44 = vld [vmem:[#allocation2 + $0x58] sm:$0xff]
    %v45 = vld [vmem:[#allocation2 + $0x60] sm:$0xff]
    %v46 = vld [vmem:[#allocation2 + $0x68] sm:$0xff]
    %v47 = vld [vmem:[#allocation2 + $0x70] sm:$0xff]
    %v48 = vld [vmem:[#allocation2 + $0x78] sm:$0xff]
    %v49 = vld [vmem:[%s2] sm:$0x3]
    %v51 = vperm.slane %v49, 0
    %v52 = vperm.slane %v49, 1
    %v57 = vunpack.c.l.b16 %v31
    %v58 = vunpack.c.l.b16 %v32
    %v59 = vpack.c.b16 %v58, %v57
    %v77 = vunpack.c.l.b16 %v33
    %v78 = vunpack.c.h.b16 %v33
    %v79 = vunpack.c.l.b16 %v34
    %v80 = vunpack.c.h.b16 %v34
    %v81 = vunpack.c.l.b16 %v35
    %v82 = vunpack.c.h.b16 %v35
    %v83 = vunpack.c.l.b16 %v36
    %v84 = vunpack.c.h.b16 %v36
    %v85 = vunpack.c.l.b16 %v37
    %v86 = vunpack.c.h.b16 %v37
    %v87 = vunpack.c.l.b16 %v38
    %v88 = vunpack.c.h.b16 %v38
    %v89 = vunpack.c.l.b16 %v39
    %v90 = vunpack.c.h.b16 %v39
    %v91 = vunpack.c.l.b16 %v40
    %v92 = vunpack.c.h.b16 %v40
    %v93 = vunpack.c.l.b16 %v41
    %v94 = vunpack.c.h.b16 %v41
    %v95 = vunpack.c.l.b16 %v42
    %v96 = vunpack.c.h.b16 %v42
    %v97 = vunpack.c.l.b16 %v43
    %v98 = vunpack.c.h.b16 %v43
    %v99 = vunpack.c.l.b16 %v44
    %v100 = vunpack.c.h.b16 %v44
    %v101 = vunpack.c.l.b16 %v45
    %v102 = vunpack.c.h.b16 %v45
    %v103 = vunpack.c.l.b16 %v46
    %v104 = vunpack.c.h.b16 %v46
    %v105 = vunpack.c.l.b16 %v47
    %v106 = vunpack.c.h.b16 %v47
    %v107 = vunpack.c.l.b16 %v48
    %v108 = vunpack.c.h.b16 %v48
    %v109 = vpack.c.b16 %v79, %v77
    %v110 = vpack.c.b16 %v80, %v78
    %v111 = vpack.c.b16 %v83, %v81
    %v112 = vpack.c.b16 %v84, %v82
    %v113 = vpack.c.b16 %v87, %v85
    %v114 = vpack.c.b16 %v88, %v86
    %v115 = vpack.c.b16 %v91, %v89
    %v116 = vpack.c.b16 %v92, %v90
    %v117 = vpack.c.b16 %v95, %v93
    %v118 = vpack.c.b16 %v96, %v94
    %v119 = vpack.c.b16 %v99, %v97
    %v120 = vpack.c.b16 %v100, %v98
    %v121 = vpack.c.b16 %v103, %v101
    %v122 = vpack.c.b16 %v104, %v102
    %v123 = vpack.c.b16 %v107, %v105
    %v124 = vpack.c.b16 %v108, %v106
    %141 = vmatpush.bf16.msra.mxu0 %v123
    %142 = vmatpush.bf16.msra.mxu0 %v121
    %143 = vmatpush.bf16.msra.mxu0 %v119
    %144 = vmatpush.bf16.msra.mxu0 %v117
    %145 = vmatpush.bf16.msra.mxu0 %v115
    %146 = vmatpush.bf16.msra.mxu0 %v113
    %147 = vmatpush.bf16.msra.mxu0 %v111
    %148 = vmatpush.bf16.msra.mxu0 %v109
    %149 = vmatmul.bf16.gmra.mxu0 %v59
    %v150 = vpop.f32.mrf.mxu0
    %v151 = vadd.f32 %v51, %v150
    %v152 = vpop.f32.mrf.mxu0
    %v153 = vadd.f32 %v51, %v152
    %154 = vdwg.mxu0
    %155 = vmatpush.bf16.msra.mxu0 %v124
    %156 = vmatpush.bf16.msra.mxu0 %v122
    %157 = vmatpush.bf16.msra.mxu0 %v120
    %158 = vmatpush.bf16.msra.mxu0 %v118
    %159 = vmatpush.bf16.msra.mxu0 %v116
    %160 = vmatpush.bf16.msra.mxu0 %v114
    %161 = vmatpush.bf16.msra.mxu0 %v112
    %162 = vmatpush.bf16.msra.mxu0 %v110
    %163 = vmatmul.bf16.gmra.mxu0 %v59
    %v164 = vpop.f32.mrf.mxu0
    %v165 = vadd.f32 %v52, %v164
    %v166 = vpop.f32.mrf.mxu0
    %v167 = vadd.f32 %v52, %v166
    %168 = vdwg.mxu0
    %v169 = vmax.f32 %v151, %v165
    %170 = vmax.xlane.f32.xlu0 %v169
    %v171 = vpop.xlane.xlu0 %170
    %v172 = vmax.f32 %v153, %v167
    %173 = vmax.xlane.f32.xlu0 %v172
    %v174 = vpop.xlane.xlu0 %173
    %v175 = vsub.f32 %v151, %v171
    %v176 = vsub.f32 %v165, %v171
    %v177 = vsub.f32 %v153, %v174
    %v178 = vsub.f32 %v167, %v174
    %v179 = vmul.f32 %v175, 1.442695
    %v180 = vpow.pop %v179
    %v181 = vmul.f32 %v176, 1.442695
    %v182 = vpow.pop %v181
    %v183 = vmul.f32 %v177, 1.442695
    %v184 = vpow.pop %v183
    %v185 = vmul.f32 %v178, 1.442695
    %v186 = vpow.pop %v185
    %v187 = vadd.f32 %v180, %v182
    %188 = vadd.xlane.f32.xlu0 %v187
    %v189 = vpop.xlane.xlu0 %188
    %v190 = vadd.f32 %v184, %v186
    %191 = vadd.xlane.f32.xlu0 %v190
    %v192 = vpop.xlane.xlu0 %191
    %v193 = vlog2.pop %v189
    %v194 = vmul.f32 %v193, 0.6931472
    %v195 = vlog2.pop %v192
    %v196 = vmul.f32 %v195, 0.6931472
    %v197 = vsub.f32 %v175, %v194
    %v198 = vsub.f32 %v176, %v194
    %v199 = vsub.f32 %v177, %v196
    %v200 = vsub.f32 %v178, %v196
    %201 = vst [vmem:[#allocation5] sm:$0xff] %v197
    %202 = vst [vmem:[#allocation5 + $0x8] sm:$0xff] %v198
    %203 = vst [vmem:[#allocation5 + $0x10] sm:$0xff] %v199
    %204 = vst [vmem:[#allocation5 + $0x18] sm:$0xff] %v200
    // Predicated region
    $region18: #{gru_model_forward.3} parent=1 // pred_check
      _
    $region19: #{gru_model_forward.3} parent=1 // pred_check_branch
      %206 = sbr.rel (0) target = $region21
    $region20: #{gru_model_forward.3} parent=1 // pred_region
      %208 = vsyncadd [#allocation4], 0
      %s209 = sshll.u32 [#allocation5], 4
      %s210 = int_to_ptr.vmem [resolvable:$true] %s209
      %s211 = sshll.u32 %s3, 4
      %s212 = int_to_ptr.hbm [resolvable:$true] %s211
      %217 = dma.vmem_to_hbm [thread:$0]  %s210, 512, %s212, [#allocation4], 256, 256, 16
    $region21: #{gru_model_forward.3} parent=1 // pred_fallthru
      _
    // Predicated region
    $region22: #{gru_model_forward.3} parent=1 // pred_check
      _
    $region23: #{gru_model_forward.3} parent=1 // pred_check_branch
      %219 = sbr.rel (0) target = $region25
    $region24: #{gru_model_forward.3} parent=1 // pred_region
      %221 = dma.done [#allocation4], 512
    $region25: #{gru_model_forward.3} parent=1 // pred_fallthru
      _
    %222 = vsyncpa [#allocation3], 1
    %223 = vsyncpa [#allocation4], 1

// kernel: gru_model_forward.2
$region0: #{gru_model_forward.2}
  #allocation0 [shape = 'u32[]', space=smem, size = 0x4, offset = 0x4, fixed_abs, tag = 'smem constant byte address 0x4 - core index']
  #allocation1 [shape = 'u32[72,128]{1,0:T(1,128)}', space=vmem, size = 0x9000, scoped, tag = 'internal scratch']
  #allocation2 [shape = 'f32[8,128]{1,0:T(8,128)}', space=vmem, size = 0x1000, scoped, tag = 'scratch operand']
  #allocation3 [shape = 'f32[64,384]{1,0:T(8,128)}', space=vmem, size = 0x18000, scoped, tag = 'scratch operand']
  %s0 = inlined_call_operand.vmem [shape: bf16[8,8,128], index: 0, kind: input, shape index: {}]
  %s1 = inlined_call_operand.vmem [shape: bf16[128,384], index: 1, kind: input, shape index: {}]
  %s2 = inlined_call_operand.vmem [shape: bf16[128,384], index: 2, kind: input, shape index: {}]
  %s3 = inlined_call_operand.vmem [shape: f32[1,384], index: 3, kind: input, shape index: {}]
  %s4 = inlined_call_operand.vmem [shape: f32[1,128], index: 4, kind: input, shape index: {}]
  %s5 = inlined_call_operand.vmem [shape: f32[8,128], index: 5, kind: input, shape index: {}]
  %s6 = inlined_call_operand.vmem [shape: bf16[8,8,128], index: 6, kind: output, shape index: {0}]
  %s7 = inlined_call_operand.vmem [shape: f32[8,128], index: 7, kind: output, shape index: {1}]
  %8 = xla_tuple %s6, %s7
  %s9 = sld [smem:[#allocation0]]
  $region46: #{gru_model_forward.2} parent=0
    _
  %s11 = ssub.s32 1, %s9
  %s12 = scalar_select 0, %s11, %s9
  // Predicated region
  $region2: #{gru_model_forward.2} parent=0 // pred_check
    _
  $region3: #{gru_model_forward.2} parent=0 // pred_check_branch
    %14 = sbr.rel (0) target = $region5
  $region4: #{gru_model_forward.2} parent=0 // pred_region
    _
  $region5: #{gru_model_forward.2} parent=0 // pred_fallthru
    _
  // Predicated region
  $region6: #{gru_model_forward.2} parent=0 // pred_check
    _
  $region7: #{gru_model_forward.2} parent=0 // pred_check_branch
    %16 = sbr.rel (0) target = $region9
  $region8: #{gru_model_forward.2} parent=0 // pred_region
    _
  $region9: #{gru_model_forward.2} parent=0 // pred_fallthru
    _
  // Predicated region
  $region10: #{gru_model_forward.2} parent=0 // pred_check
    _
  $region11: #{gru_model_forward.2} parent=0 // pred_check_branch
    %18 = sbr.rel (0) target = $region13
  $region12: #{gru_model_forward.2} parent=0 // pred_region
    _
  $region13: #{gru_model_forward.2} parent=0 // pred_fallthru
    _
  // Predicated region
  $region14: #{gru_model_forward.2} parent=0 // pred_check
    _
  $region15: #{gru_model_forward.2} parent=0 // pred_check_branch
    %20 = sbr.rel (0) target = $region17
  $region16: #{gru_model_forward.2} parent=0 // pred_region
    _
  $region17: #{gru_model_forward.2} parent=0 // pred_fallthru
    _
  // Predicated region
  $region18: #{gru_model_forward.2} parent=0 // pred_check
    _
  $region19: #{gru_model_forward.2} parent=0 // pred_check_branch
    %22 = sbr.rel (0) target = $region21
  $region20: #{gru_model_forward.2} parent=0 // pred_region
    _
  $region21: #{gru_model_forward.2} parent=0 // pred_fallthru
    _
  // Predicated region
  $region22: #{gru_model_forward.2} parent=0 // pred_check
    _
  $region23: #{gru_model_forward.2} parent=0 // pred_check_branch
    %24 = sbr.rel (0) target = $region25
  $region24: #{gru_model_forward.2} parent=0 // pred_region
    _
  $region25: #{gru_model_forward.2} parent=0 // pred_fallthru
    _
  %p25 = scmp.eq.s32.totalorder 0, 0
  // Predicated region
  $region26: #{gru_model_forward.2} parent=0 // pred_check
    %p26 = pneg %p25
  $region27: #{gru_model_forward.2} parent=0 // pred_check_branch
    %28 = sbr.rel (%p26) target = $region29
  $region28: #{gru_model_forward.2} parent=0 // pred_region
    %v29 = vld [vmem:[%s5] sm:$0xff]
    %30 = vst [vmem:[#allocation2] sm:$0xff] %v29
  $region29: #{gru_model_forward.2} parent=0 // pred_fallthru
    _
  %v31 = vld [vmem:[%s0] sm:$0xf]
  %v32 = vld [vmem:[%s0 + $0x4] sm:$0xf]
  %v33 = vld [vmem:[%s0 + $0x8] sm:$0xf]
  %v34 = vld [vmem:[%s0 + $0xc] sm:$0xf]
  %v35 = vld [vmem:[%s0 + $0x10] sm:$0xf]
  %v36 = vld [vmem:[%s0 + $0x14] sm:$0xf]
  %v37 = vld [vmem:[%s0 + $0x18] sm:$0xf]
  %v38 = vld [vmem:[%s0 + $0x1c] sm:$0xf]
  %v39 = vld [vmem:[%s1] sm:$0xff]
  %v40 = vld [vmem:[%s1 + $0x8] sm:$0xf]
  %v41 = vld [vmem:[%s1 + $0xc] sm:$0xff]
  %v42 = vld [vmem:[%s1 + $0x14] sm:$0xf]
  %v43 = vld [vmem:[%s1 + $0x18] sm:$0xff]
  %v44 = vld [vmem:[%s1 + $0x20] sm:$0xf]
  %v45 = vld [vmem:[%s1 + $0x24] sm:$0xff]
  %v46 = vld [vmem:[%s1 + $0x2c] sm:$0xf]
  %v47 = vld [vmem:[%s1 + $0x30] sm:$0xff]
  %v48 = vld [vmem:[%s1 + $0x38] sm:$0xf]
  %v49 = vld [vmem:[%s1 + $0x3c] sm:$0xff]
  %v50 = vld [vmem:[%s1 + $0x44] sm:$0xf]
  %v51 = vld [vmem:[%s1 + $0x48] sm:$0xff]
  %v52 = vld [vmem:[%s1 + $0x50] sm:$0xf]
  %v53 = vld [vmem:[%s1 + $0x54] sm:$0xff]
  %v54 = vld [vmem:[%s1 + $0x5c] sm:$0xf]
  %v55 = vld [vmem:[%s1 + $0x60] sm:$0xff]
  %v56 = vld [vmem:[%s1 + $0x68] sm:$0xf]
  %v57 = vld [vmem:[%s1 + $0x6c] sm:$0xff]
  %v58 = vld [vmem:[%s1 + $0x74] sm:$0xf]
  %v59 = vld [vmem:[%s1 + $0x78] sm:$0xff]
  %v60 = vld [vmem:[%s1 + $0x80] sm:$0xf]
  %v61 = vld [vmem:[%s1 + $0x84] sm:$0xff]
  %v62 = vld [vmem:[%s1 + $0x8c] sm:$0xf]
  %v63 = vld [vmem:[%s1 + $0x90] sm:$0xff]
  %v64 = vld [vmem:[%s1 + $0x98] sm:$0xf]
  %v65 = vld [vmem:[%s1 + $0x9c] sm:$0xff]
  %v66 = vld [vmem:[%s1 + $0xa4] sm:$0xf]
  %v67 = vld [vmem:[%s1 + $0xa8] sm:$0xff]
  %v68 = vld [vmem:[%s1 + $0xb0] sm:$0xf]
  %v69 = vld [vmem:[%s1 + $0xb4] sm:$0xff]
  %v70 = vld [vmem:[%s1 + $0xbc] sm:$0xf]
  %v71 = vld [vmem:[%s3] sm:$0x7]
  %v73 = vperm.slane %v71, 0
  %v74 = vperm.slane %v71, 1
  %v75 = vperm.slane %v71, 2
  %v87 = vunpack.c.l.b16 %v31
  %v88 = vunpack.c.l.b16 %v32
  %v89 = vunpack.c.l.b16 %v33
  %v90 = vunpack.c.l.b16 %v34
  %v91 = vunpack.c.l.b16 %v35
  %v92 = vunpack.c.l.b16 %v36
  %v93 = vunpack.c.l.b16 %v37
  %v94 = vunpack.c.l.b16 %v38
  %v95 = vpack.c.b16 %v88, %v87
  %v96 = vpack.c.b16 %v90, %v89
  %v97 = vpack.c.b16 %v92, %v91
  %v98 = vpack.c.b16 %v94, %v93
  %v135 = vunpack.c.l.b16 %v39
  %v136 = vunpack.c.h.b16 %v39
  %v137 = vunpack.c.l.b16 %v40
  %v138 = vunpack.c.l.b16 %v41
  %v139 = vunpack.c.h.b16 %v41
  %v140 = vunpack.c.l.b16 %v42
  %v141 = vunpack.c.l.b16 %v43
  %v142 = vunpack.c.h.b16 %v43
  %v143 = vunpack.c.l.b16 %v44
  %v144 = vunpack.c.l.b16 %v45
  %v145 = vunpack.c.h.b16 %v45
  %v146 = vunpack.c.l.b16 %v46
  %v147 = vunpack.c.l.b16 %v47
  %v148 = vunpack.c.h.b16 %v47
  %v149 = vunpack.c.l.b16 %v48
  %v150 = vunpack.c.l.b16 %v49
  %v151 = vunpack.c.h.b16 %v49
  %v152 = vunpack.c.l.b16 %v50
  %v153 = vunpack.c.l.b16 %v51
  %v154 = vunpack.c.h.b16 %v51
  %v155 = vunpack.c.l.b16 %v52
  %v156 = vunpack.c.l.b16 %v53
  %v157 = vunpack.c.h.b16 %v53
  %v158 = vunpack.c.l.b16 %v54
  %v159 = vunpack.c.l.b16 %v55
  %v160 = vunpack.c.h.b16 %v55
  %v161 = vunpack.c.l.b16 %v56
  %v162 = vunpack.c.l.b16 %v57
  %v163 = vunpack.c.h.b16 %v57
  %v164 = vunpack.c.l.b16 %v58
  %v165 = vunpack.c.l.b16 %v59
  %v166 = vunpack.c.h.b16 %v59
  %v167 = vunpack.c.l.b16 %v60
  %v168 = vunpack.c.l.b16 %v61
  %v169 = vunpack.c.h.b16 %v61
  %v170 = vunpack.c.l.b16 %v62
  %v171 = vunpack.c.l.b16 %v63
  %v172 = vunpack.c.h.b16 %v63
  %v173 = vunpack.c.l.b16 %v64
  %v174 = vunpack.c.l.b16 %v65
  %v175 = vunpack.c.h.b16 %v65
  %v176 = vunpack.c.l.b16 %v66
  %v177 = vunpack.c.l.b16 %v67
  %v178 = vunpack.c.h.b16 %v67
  %v179 = vunpack.c.l.b16 %v68
  %v180 = vunpack.c.l.b16 %v69
  %v181 = vunpack.c.h.b16 %v69
  %v182 = vunpack.c.l.b16 %v70
  %v183 = vpack.c.b16 %v138, %v135
  %v184 = vpack.c.b16 %v139, %v136
  %v185 = vpack.c.b16 %v140, %v137
  %v186 = vpack.c.b16 %v144, %v141
  %v187 = vpack.c.b16 %v145, %v142
  %v188 = vpack.c.b16 %v146, %v143
  %v189 = vpack.c.b16 %v150, %v147
  %v190 = vpack.c.b16 %v151, %v148
  %v191 = vpack.c.b16 %v152, %v149
  %v192 = vpack.c.b16 %v156, %v153
  %v193 = vpack.c.b16 %v157, %v154
  %v194 = vpack.c.b16 %v158, %v155
  %v195 = vpack.c.b16 %v162, %v159
  %v196 = vpack.c.b16 %v163, %v160
  %v197 = vpack.c.b16 %v164, %v161
  %v198 = vpack.c.b16 %v168, %v165
  %v199 = vpack.c.b16 %v169, %v166
  %v200 = vpack.c.b16 %v170, %v167
  %v201 = vpack.c.b16 %v174, %v171
  %v202 = vpack.c.b16 %v175, %v172
  %v203 = vpack.c.b16 %v176, %v173
  %v204 = vpack.c.b16 %v180, %v177
  %v205 = vpack.c.b16 %v181, %v178
  %v206 = vpack.c.b16 %v182, %v179
  %231 = vmatpush.bf16.msra.mxu0 %v204
  %232 = vmatpush.bf16.msra.mxu0 %v201
  %233 = vmatpush.bf16.msra.mxu0 %v198
  %234 = vmatpush.bf16.msra.mxu0 %v195
  %235 = vmatpush.bf16.msra.mxu0 %v192
  %236 = vmatpush.bf16.msra.mxu0 %v189
  %237 = vmatpush.bf16.msra.mxu0 %v186
  %238 = vmatpush.bf16.msra.mxu0 %v183
  %239 = vmatmul.bf16.gmra.mxu0 %v95
  %v240 = vpop.f32.mrf.mxu0
  %v241 = vadd.f32 %v73, %v240
  %v242 = vpop.f32.mrf.mxu0
  %v243 = vadd.f32 %v73, %v242
  %244 = vmatmul.bf16.gmra.mxu0 %v96
  %v245 = vpop.f32.mrf.mxu0
  %v246 = vadd.f32 %v73, %v245
  %v247 = vpop.f32.mrf.mxu0
  %v248 = vadd.f32 %v73, %v247
  %249 = vmatmul.bf16.gmra.mxu0 %v97
  %v250 = vpop.f32.mrf.mxu0
  %v251 = vadd.f32 %v73, %v250
  %v252 = vpop.f32.mrf.mxu0
  %v253 = vadd.f32 %v73, %v252
  %254 = vmatmul.bf16.gmra.mxu0 %v98
  %v255 = vpop.f32.mrf.mxu0
  %v256 = vadd.f32 %v73, %v255
  %v257 = vpop.f32.mrf.mxu0
  %v258 = vadd.f32 %v73, %v257
  %259 = vdwg.mxu0
  %260 = vmatpush.bf16.msra.mxu0 %v205
  %261 = vmatpush.bf16.msra.mxu0 %v202
  %262 = vmatpush.bf16.msra.mxu0 %v199
  %263 = vmatpush.bf16.msra.mxu0 %v196
  %264 = vmatpush.bf16.msra.mxu0 %v193
  %265 = vmatpush.bf16.msra.mxu0 %v190
  %266 = vmatpush.bf16.msra.mxu0 %v187
  %267 = vmatpush.bf16.msra.mxu0 %v184
  %268 = vmatmul.bf16.gmra.mxu0 %v95
  %v269 = vpop.f32.mrf.mxu0
  %v270 = vadd.f32 %v74, %v269
  %v271 = vpop.f32.mrf.mxu0
  %v272 = vadd.f32 %v74, %v271
  %273 = vmatmul.bf16.gmra.mxu0 %v96
  %v274 = vpop.f32.mrf.mxu0
  %v275 = vadd.f32 %v74, %v274
  %v276 = vpop.f32.mrf.mxu0
  %v277 = vadd.f32 %v74, %v276
  %278 = vmatmul.bf16.gmra.mxu0 %v97
  %v279 = vpop.f32.mrf.mxu0
  %v280 = vadd.f32 %v74, %v279
  %v281 = vpop.f32.mrf.mxu0
  %v282 = vadd.f32 %v74, %v281
  %283 = vmatmul.bf16.gmra.mxu0 %v98
  %v284 = vpop.f32.mrf.mxu0
  %v285 = vadd.f32 %v74, %v284
  %v286 = vpop.f32.mrf.mxu0
  %v287 = vadd.f32 %v74, %v286
  %288 = vdwg.mxu0
  %289 = vmatpush.bf16.msra.mxu0 %v206
  %290 = vmatpush.bf16.msra.mxu0 %v203
  %291 = vmatpush.bf16.msra.mxu0 %v200
  %292 = vmatpush.bf16.msra.mxu0 %v197
  %293 = vmatpush.bf16.msra.mxu0 %v194
  %294 = vmatpush.bf16.msra.mxu0 %v191
  %295 = vmatpush.bf16.msra.mxu0 %v188
  %296 = vmatpush.bf16.msra.mxu0 %v185
  %297 = vmatmul.bf16.gmra.mxu0 %v95
  %v298 = vpop.f32.mrf.mxu0
  %v299 = vadd.f32 %v75, %v298
  %v300 = vpop.f32.mrf.mxu0
  %v301 = vadd.f32 %v75, %v300
  %302 = vmatmul.bf16.gmra.mxu0 %v96
  %v303 = vpop.f32.mrf.mxu0
  %v304 = vadd.f32 %v75, %v303
  %v305 = vpop.f32.mrf.mxu0
  %v306 = vadd.f32 %v75, %v305
  %307 = vmatmul.bf16.gmra.mxu0 %v97
  %v308 = vpop.f32.mrf.mxu0
  %v309 = vadd.f32 %v75, %v308
  %v310 = vpop.f32.mrf.mxu0
  %v311 = vadd.f32 %v75, %v310
  %312 = vmatmul.bf16.gmra.mxu0 %v98
  %v313 = vpop.f32.mrf.mxu0
  %v314 = vadd.f32 %v75, %v313
  %v315 = vpop.f32.mrf.mxu0
  %v316 = vadd.f32 %v75, %v315
  %317 = vdwg.mxu0
  %318 = vst [vmem:[#allocation3] sm:$0xff] %v241
  %319 = vst [vmem:[#allocation3 + $0x8] sm:$0xff] %v270
  %320 = vst [vmem:[#allocation3 + $0x10] sm:$0xff] %v299
  %321 = vst [vmem:[#allocation3 + $0x18] sm:$0xff] %v243
  %322 = vst [vmem:[#allocation3 + $0x20] sm:$0xff] %v272
  %323 = vst [vmem:[#allocation3 + $0x28] sm:$0xff] %v301
  %324 = vst [vmem:[#allocation3 + $0x30] sm:$0xff] %v246
  %325 = vst [vmem:[#allocation3 + $0x38] sm:$0xff] %v275
  %326 = vst [vmem:[#allocation3 + $0x40] sm:$0xff] %v304
  %327 = vst [vmem:[#allocation3 + $0x48] sm:$0xff] %v248
  %328 = vst [vmem:[#allocation3 + $0x50] sm:$0xff] %v277
  %329 = vst [vmem:[#allocation3 + $0x58] sm:$0xff] %v306
  %330 = vst [vmem:[#allocation3 + $0x60] sm:$0xff] %v251
  %331 = vst [vmem:[#allocation3 + $0x68] sm:$0xff] %v280
  %332 = vst [vmem:[#allocation3 + $0x70] sm:$0xff] %v309
  %333 = vst [vmem:[#allocation3 + $0x78] sm:$0xff] %v253
  %334 = vst [vmem:[#allocation3 + $0x80] sm:$0xff] %v282
  %335 = vst [vmem:[#allocation3 + $0x88] sm:$0xff] %v311
  %336 = vst [vmem:[#allocation3 + $0x90] sm:$0xff] %v256
  %337 = vst [vmem:[#allocation3 + $0x98] sm:$0xff] %v285
  %338 = vst [vmem:[#allocation3 + $0xa0] sm:$0xff] %v314
  %339 = vst [vmem:[#allocation3 + $0xa8] sm:$0xff] %v258
  %340 = vst [vmem:[#allocation3 + $0xb0] sm:$0xff] %v287
  %341 = vst [vmem:[#allocation3 + $0xb8] sm:$0xff] %v316
  %v342 = vld [vmem:[%s2] sm:$0xff]
  %v343 = vld [vmem:[%s2 + $0x8] sm:$0xf]
  %v344 = vld [vmem:[%s2 + $0xc] sm:$0xff]
  %v345 = vld [vmem:[%s2 + $0x14] sm:$0xf]
  %v346 = vld [vmem:[%s2 + $0x18] sm:$0xff]
  %v347 = vld [vmem:[%s2 + $0x20] sm:$0xf]
  %v348 = vld [vmem:[%s2 + $0x24] sm:$0xff]
  %v349 = vld [vmem:[%s2 + $0x2c] sm:$0xf]
  %v350 = vld [vmem:[%s2 + $0x30] sm:$0xff]
  %v351 = vld [vmem:[%s2 + $0x38] sm:$0xf]
  %v352 = vld [vmem:[%s2 + $0x3c] sm:$0xff]
  %v353 = vld [vmem:[%s2 + $0x44] sm:$0xf]
  %v354 = vld [vmem:[%s2 + $0x48] sm:$0xff]
  %v355 = vld [vmem:[%s2 + $0x50] sm:$0xf]
  %v356 = vld [vmem:[%s2 + $0x54] sm:$0xff]
  %v357 = vld [vmem:[%s2 + $0x5c] sm:$0xf]
  %v358 = vld [vmem:[%s2 + $0x60] sm:$0xff]
  %v359 = vld [vmem:[%s2 + $0x68] sm:$0xf]
  %v360 = vld [vmem:[%s2 + $0x6c] sm:$0xff]
  %v361 = vld [vmem:[%s2 + $0x74] sm:$0xf]
  %v362 = vld [vmem:[%s2 + $0x78] sm:$0xff]
  %v363 = vld [vmem:[%s2 + $0x80] sm:$0xf]
  %v364 = vld [vmem:[%s2 + $0x84] sm:$0xff]
  %v365 = vld [vmem:[%s2 + $0x8c] sm:$0xf]
  %v366 = vld [vmem:[%s2 + $0x90] sm:$0xff]
  %v367 = vld [vmem:[%s2 + $0x98] sm:$0xf]
  %v368 = vld [vmem:[%s2 + $0x9c] sm:$0xff]
  %v369 = vld [vmem:[%s2 + $0xa4] sm:$0xf]
  %v370 = vld [vmem:[%s2 + $0xa8] sm:$0xff]
  %v371 = vld [vmem:[%s2 + $0xb0] sm:$0xf]
  %v372 = vld [vmem:[%s2 + $0xb4] sm:$0xff]
  %v373 = vld [vmem:[%s2 + $0xbc] sm:$0xf]
  %v374 = vld [vmem:[%s4] sm:$0x1]
  %v375 = vld [vmem:[#allocation2] sm:$0xff]
  %v376 = vpack.c.bf16 %v375, %v375
  %s377 = smul.u32 0, 3
  %s378 = smul.addr %s377, 8
  %s379 = scalar_lea.vmem [#allocation3], %s378
  %v380 = vld [vmem:[%s379] sm:$0xff]
  %v381 = vld [vmem:[%s379 + $0x8] sm:$0xff]
  %v382 = vld [vmem:[%s379 + $0x10] sm:$0xff]
  %v415 = vunpack.c.l.b16 %v342
  %v416 = vunpack.c.h.b16 %v342
  %v417 = vunpack.c.l.b16 %v343
  %v418 = vunpack.c.l.b16 %v344
  %v419 = vunpack.c.h.b16 %v344
  %v420 = vunpack.c.l.b16 %v345
  %v421 = vunpack.c.l.b16 %v346
  %v422 = vunpack.c.h.b16 %v346
  %v423 = vunpack.c.l.b16 %v347
  %v424 = vunpack.c.l.b16 %v348
  %v425 = vunpack.c.h.b16 %v348
  %v426 = vunpack.c.l.b16 %v349
  %v427 = vunpack.c.l.b16 %v350
  %v428 = vunpack.c.h.b16 %v350
  %v429 = vunpack.c.l.b16 %v351
  %v430 = vunpack.c.l.b16 %v352
  %v431 = vunpack.c.h.b16 %v352
  %v432 = vunpack.c.l.b16 %v353
  %v433 = vunpack.c.l.b16 %v354
  %v434 = vunpack.c.h.b16 %v354
  %v435 = vunpack.c.l.b16 %v355
  %v436 = vunpack.c.l.b16 %v356
  %v437 = vunpack.c.h.b16 %v356
  %v438 = vunpack.c.l.b16 %v357
  %v439 = vunpack.c.l.b16 %v358
  %v440 = vunpack.c.h.b16 %v358
  %v441 = vunpack.c.l.b16 %v359
  %v442 = vunpack.c.l.b16 %v360
  %v443 = vunpack.c.h.b16 %v360
  %v444 = vunpack.c.l.b16 %v361
  %v445 = vunpack.c.l.b16 %v362
  %v446 = vunpack.c.h.b16 %v362
  %v447 = vunpack.c.l.b16 %v363
  %v448 = vunpack.c.l.b16 %v364
  %v449 = vunpack.c.h.b16 %v364
  %v450 = vunpack.c.l.b16 %v365
  %v451 = vunpack.c.l.b16 %v366
  %v452 = vunpack.c.h.b16 %v366
  %v453 = vunpack.c.l.b16 %v367
  %v454 = vunpack.c.l.b16 %v368
  %v455 = vunpack.c.h.b16 %v368
  %v456 = vunpack.c.l.b16 %v369
  %v457 = vunpack.c.l.b16 %v370
  %v458 = vunpack.c.h.b16 %v370
  %v459 = vunpack.c.l.b16 %v371
  %v460 = vunpack.c.l.b16 %v372
  %v461 = vunpack.c.h.b16 %v372
  %v462 = vunpack.c.l.b16 %v373
  %v463 = vpack.c.b16 %v418, %v415
  %v464 = vpack.c.b16 %v419, %v416
  %v465 = vpack.c.b16 %v420, %v417
  %v466 = vpack.c.b16 %v424, %v421
  %v467 = vpack.c.b16 %v425, %v422
  %v468 = vpack.c.b16 %v426, %v423
  %v469 = vpack.c.b16 %v430, %v427
  %v470 = vpack.c.b16 %v431, %v428
  %v471 = vpack.c.b16 %v432, %v429
  %v472 = vpack.c.b16 %v436, %v433
  %v473 = vpack.c.b16 %v437, %v434
  %v474 = vpack.c.b16 %v438, %v435
  %v475 = vpack.c.b16 %v442, %v439
  %v476 = vpack.c.b16 %v443, %v440
  %v477 = vpack.c.b16 %v444, %v441
  %v478 = vpack.c.b16 %v448, %v445
  %v479 = vpack.c.b16 %v449, %v446
  %v480 = vpack.c.b16 %v450, %v447
  %v481 = vpack.c.b16 %v454, %v451
  %v482 = vpack.c.b16 %v455, %v452
  %v483 = vpack.c.b16 %v456, %v453
  %v484 = vpack.c.b16 %v460, %v457
  %v485 = vpack.c.b16 %v461, %v458
  %v486 = vpack.c.b16 %v462, %v459
  %511 = vmatpush.bf16.msra.mxu0 %v484
  %512 = vmatpush.bf16.msra.mxu0 %v481
  %513 = vmatpush.bf16.msra.mxu0 %v478
  %514 = vmatpush.bf16.msra.mxu0 %v475
  %515 = vmatpush.bf16.msra.mxu0 %v472
  %516 = vmatpush.bf16.msra.mxu0 %v469
  %517 = vmatpush.bf16.msra.mxu0 %v466
  %518 = vmatpush.bf16.msra.mxu0 %v463
  %519 = vmatmul.bf16.gmra.mxu0 %v376
  %v520 = vpop.f32.mrf.mxu0
  %v521 = vadd.f32 0.0, %v520
  %v522 = vpop.f32.mrf.mxu0
  %523 = vdwg.mxu0
  %524 = vmatpush.bf16.msra.mxu0 %v485
  %525 = vmatpush.bf16.msra.mxu0 %v482
  %526 = vmatpush.bf16.msra.mxu0 %v479
  %527 = vmatpush.bf16.msra.mxu0 %v476
  %528 = vmatpush.bf16.msra.mxu0 %v473
  %529 = vmatpush.bf16.msra.mxu0 %v470
  %530 = vmatpush.bf16.msra.mxu0 %v467
  %531 = vmatpush.bf16.msra.mxu0 %v464
  %532 = vmatmul.bf16.gmra.mxu0 %v376
  %v533 = vpop.f32.mrf.mxu0
  %v534 = vadd.f32 0.0, %v533
  %v535 = vpop.f32.mrf.mxu0
  %536 = vdwg.mxu0
  %537 = vmatpush.bf16.msra.mxu0 %v486
  %538 = vmatpush.bf16.msra.mxu0 %v483
  %539 = vmatpush.bf16.msra.mxu0 %v480
  %540 = vmatpush.bf16.msra.mxu0 %v477
  %541 = vmatpush.bf16.msra.mxu0 %v474
  %542 = vmatpush.bf16.msra.mxu0 %v471
  %543 = vmatpush.bf16.msra.mxu0 %v468
  %544 = vmatpush.bf16.msra.mxu0 %v465
  %545 = vmatmul.bf16.gmra.mxu0 %v376
  %v546 = vpop.f32.mrf.mxu0
  %v547 = vadd.f32 0.0, %v546
  %v548 = vpop.f32.mrf.mxu0
  %549 = vdwg.mxu0
  %v550 = vadd.f32 %v380, %v521
  %v551 = vxor.u32 %v550, 2147483648
  %v552 = vmul.f32 %v551, 1.442695
  %v553 = vpow.pop %v552
  %v554 = vadd.f32 %v553, 1.0
  %v555 = vrcp.pop %v554
  %v556 = vmul.f32 %v554, %v555
  %v557 = vsub.f32 1.0, %v556
  %v558 = vmul.f32 %v555, %v557
  %v559 = vadd.f32 %v555, %v558
  %vm560 = vweird.f32 %v554
  %vm561 = vweird.f32 %v555
  %vm562 = vmor %vm560, %vm561
  %v563 = vsel %vm562, %v555, %v559
  %v564 = vand.u32 2147483647, %v554
  %vm565 = vcmp.eq.f32.partialorder %v564, 8.507059e+37
  %v566 = vand.u32 %v554, 2147483648
  %v567 = vor.u32 1.1754944e-38, %v566
  %v568 = vsel %vm565, %v567, %v563
  %v569 = vmul.f32 1.0, %v568
  %v570 = vadd.f32 %v381, %v534
  %v571 = vxor.u32 %v570, 2147483648
  %v572 = vmul.f32 %v571, 1.442695
  %v573 = vpow.pop %v572
  %v574 = vadd.f32 %v573, 1.0
  %v575 = vrcp.pop %v574
  %v576 = vmul.f32 %v574, %v575
  %v577 = vsub.f32 1.0, %v576
  %v578 = vmul.f32 %v575, %v577
  %v579 = vadd.f32 %v575, %v578
  %vm580 = vweird.f32 %v574
  %vm581 = vweird.f32 %v575
  %vm582 = vmor %vm580, %vm581
  %v583 = vsel %vm582, %v575, %v579
  %v584 = vand.u32 2147483647, %v574
  %vm585 = vcmp.eq.f32.partialorder %v584, 8.507059e+37
  %v586 = vand.u32 %v574, 2147483648
  %v587 = vor.u32 1.1754944e-38, %v586
  %v588 = vsel %vm585, %v587, %v583
  %v589 = vmul.f32 1.0, %v588
  %v591 = vperm.slane %v374, 0
  %v593 = vadd.f32 %v547, %v591
  %v594 = vmul.f32 %v569, %v593
  %v595 = vadd.f32 %v382, %v594
  %v596 = vtanh.pop %v595
  %v597 = vsub.f32 1.0, %v589
  %v598 = vmul.f32 %v597, %v596
  %v599 = vmul.f32 %v589, %v375
  %v600 = vadd.f32 %v598, %v599
  %v601 = vpack.c.bf16 %v600, %v600
  %602 = vst [vmem:[%s6] sm:$0xf] %v601
  %s603 = smul.u32 1, 3
  %s604 = smul.addr %s603, 8
  %s605 = scalar_lea.vmem [#allocation3], %s604
  %v606 = vld [vmem:[%s605] sm:$0xff]
  %v607 = vld [vmem:[%s605 + $0x8] sm:$0xff]
  %v608 = vld [vmem:[%s605 + $0x10] sm:$0xff]
  %609 = vmatpush.bf16.msra.mxu0 %v484
  %610 = vmatpush.bf16.msra.mxu0 %v481
  %611 = vmatpush.bf16.msra.mxu0 %v478
  %612 = vmatpush.bf16.msra.mxu0 %v475
  %613 = vmatpush.bf16.msra.mxu0 %v472
  %614 = vmatpush.bf16.msra.mxu0 %v469
  %615 = vmatpush.bf16.msra.mxu0 %v466
  %616 = vmatpush.bf16.msra.mxu0 %v463
  %617 = vmatmul.bf16.gmra.mxu0 %v601
  %v618 = vpop.f32.mrf.mxu0
  %v619 = vadd.f32 0.0, %v618
  %v620 = vpop.f32.mrf.mxu0
  %621 = vdwg.mxu0
  %622 = vmatpush.bf16.msra.mxu0 %v485
  %623 = vmatpush.bf16.msra.mxu0 %v482
  %624 = vmatpush.bf16.msra.mxu0 %v479
  %625 = vmatpush.bf16.msra.mxu0 %v476
  %626 = vmatpush.bf16.msra.mxu0 %v473
  %627 = vmatpush.bf16.msra.mxu0 %v470
  %628 = vmatpush.bf16.msra.mxu0 %v467
  %629 = vmatpush.bf16.msra.mxu0 %v464
  %630 = vmatmul.bf16.gmra.mxu0 %v601
  %v631 = vpop.f32.mrf.mxu0
  %v632 = vadd.f32 0.0, %v631
  %v633 = vpop.f32.mrf.mxu0
  %634 = vdwg.mxu0
  %635 = vmatpush.bf16.msra.mxu0 %v486
  %636 = vmatpush.bf16.msra.mxu0 %v483
  %637 = vmatpush.bf16.msra.mxu0 %v480
  %638 = vmatpush.bf16.msra.mxu0 %v477
  %639 = vmatpush.bf16.msra.mxu0 %v474
  %640 = vmatpush.bf16.msra.mxu0 %v471
  %641 = vmatpush.bf16.msra.mxu0 %v468
  %642 = vmatpush.bf16.msra.mxu0 %v465
  %643 = vmatmul.bf16.gmra.mxu0 %v601
  %v644 = vpop.f32.mrf.mxu0
  %v645 = vadd.f32 0.0, %v644
  %v646 = vpop.f32.mrf.mxu0
  %647 = vdwg.mxu0
  %v648 = vadd.f32 %v606, %v619
  %v649 = vxor.u32 %v648, 2147483648
  %v650 = vmul.f32 %v649, 1.442695
  %v651 = vpow.pop %v650
  %v652 = vadd.f32 %v651, 1.0
  %v653 = vrcp.pop %v652
  %v654 = vmul.f32 %v652, %v653
  %v655 = vsub.f32 1.0, %v654
  %v656 = vmul.f32 %v653, %v655
  %v657 = vadd.f32 %v653, %v656
  %vm658 = vweird.f32 %v652
  %vm659 = vweird.f32 %v653
  %vm660 = vmor %vm658, %vm659
  %v661 = vsel %vm660, %v653, %v657
  %v662 = vand.u32 2147483647, %v652
  %vm663 = vcmp.eq.f32.partialorder %v662, 8.507059e+37
  %v664 = vand.u32 %v652, 2147483648
  %v665 = vor.u32 1.1754944e-38, %v664
  %v666 = vsel %vm663, %v665, %v661
  %v667 = vmul.f32 1.0, %v666
  %v668 = vadd.f32 %v607, %v632
  %v669 = vxor.u32 %v668, 2147483648
  %v670 = vmul.f32 %v669, 1.442695
  %v671 = vpow.pop %v670
  %v672 = vadd.f32 %v671, 1.0
  %v673 = vrcp.pop %v672
  %v674 = vmul.f32 %v672, %v673
  %v675 = vsub.f32 1.0, %v674
  %v676 = vmul.f32 %v673, %v675
  %v677 = vadd.f32 %v673, %v676
  %vm678 = vweird.f32 %v672
  %vm679 = vweird.f32 %v673
  %vm680 = vmor %vm678, %vm679
  %v681 = vsel %vm680, %v673, %v677
  %v682 = vand.u32 2147483647, %v672
  %vm683 = vcmp.eq.f32.partialorder %v682, 8.507059e+37
  %v684 = vand.u32 %v672, 2147483648
  %v685 = vor.u32 1.1754944e-38, %v684
  %v686 = vsel %vm683, %v685, %v681
  %v687 = vmul.f32 1.0, %v686
  %v688 = vadd.f32 %v645, %v591
  %v689 = vmul.f32 %v667, %v688
  %v690 = vadd.f32 %v608, %v689
  %v691 = vtanh.pop %v690
  %v692 = vsub.f32 1.0, %v687
  %v693 = vmul.f32 %v692, %v691
  %v694 = vmul.f32 %v687, %v600
  %v695 = vadd.f32 %v693, %v694
  %v696 = vpack.c.bf16 %v695, %v695
  %s697 = scalar_lea.vmem %s6, 4
  %698 = vst [vmem:[%s697] sm:$0xf] %v696
  %s699 = smul.u32 2, 3
  %s700 = smul.addr %s699, 8
  %s701 = scalar_lea.vmem [#allocation3], %s700
  %v702 = vld [vmem:[%s701] sm:$0xff]
  %v703 = vld [vmem:[%s701 + $0x8] sm:$0xff]
  %v704 = vld [vmem:[%s701 + $0x10] sm:$0xff]
  %705 = vmatpush.bf16.msra.mxu0 %v484
  %706 = vmatpush.bf16.msra.mxu0 %v481
  %707 = vmatpush.bf16.msra.mxu0 %v478
  %708 = vmatpush.bf16.msra.mxu0 %v475
  %709 = vmatpush.bf16.msra.mxu0 %v472
  %710 = vmatpush.bf16.msra.mxu0 %v469
  %711 = vmatpush.bf16.msra.mxu0 %v466
  %712 = vmatpush.bf16.msra.mxu0 %v463
  %713 = vmatmul.bf16.gmra.mxu0 %v696
  %v714 = vpop.f32.mrf.mxu0
  %v715 = vadd.f32 0.0, %v714
  %v716 = vpop.f32.mrf.mxu0
  %717 = vdwg.mxu0
  %718 = vmatpush.bf16.msra.mxu0 %v485
  %719 = vmatpush.bf16.msra.mxu0 %v482
  %720 = vmatpush.bf16.msra.mxu0 %v479
  %721 = vmatpush.bf16.msra.mxu0 %v476
  %722 = vmatpush.bf16.msra.mxu0 %v473
  %723 = vmatpush.bf16.msra.mxu0 %v470
  %724 = vmatpush.bf16.msra.mxu0 %v467
  %725 = vmatpush.bf16.msra.mxu0 %v464
  %726 = vmatmul.bf16.gmra.mxu0 %v696
  %v727 = vpop.f32.mrf.mxu0
  %v728 = vadd.f32 0.0, %v727
  %v729 = vpop.f32.mrf.mxu0
  %730 = vdwg.mxu0
  %731 = vmatpush.bf16.msra.mxu0 %v486
  %732 = vmatpush.bf16.msra.mxu0 %v483
  %733 = vmatpush.bf16.msra.mxu0 %v480
  %734 = vmatpush.bf16.msra.mxu0 %v477
  %735 = vmatpush.bf16.msra.mxu0 %v474
  %736 = vmatpush.bf16.msra.mxu0 %v471
  %737 = vmatpush.bf16.msra.mxu0 %v468
  %738 = vmatpush.bf16.msra.mxu0 %v465
  %739 = vmatmul.bf16.gmra.mxu0 %v696
  %v740 = vpop.f32.mrf.mxu0
  %v741 = vadd.f32 0.0, %v740
  %v742 = vpop.f32.mrf.mxu0
  %743 = vdwg.mxu0
  %v744 = vadd.f32 %v702, %v715
  %v745 = vxor.u32 %v744, 2147483648
  %v746 = vmul.f32 %v745, 1.442695
  %v747 = vpow.pop %v746
  %v748 = vadd.f32 %v747, 1.0
  %v749 = vrcp.pop %v748
  %v750 = vmul.f32 %v748, %v749
  %v751 = vsub.f32 1.0, %v750
  %v752 = vmul.f32 %v749, %v751
  %v753 = vadd.f32 %v749, %v752
  %vm754 = vweird.f32 %v748
  %vm755 = vweird.f32 %v749
  %vm756 = vmor %vm754, %vm755
  %v757 = vsel %vm756, %v749, %v753
  %v758 = vand.u32 2147483647, %v748
  %vm759 = vcmp.eq.f32.partialorder %v758, 8.507059e+37
  %v760 = vand.u32 %v748, 2147483648
  %v761 = vor.u32 1.1754944e-38, %v760
  %v762 = vsel %vm759, %v761, %v757
  %v763 = vmul.f32 1.0, %v762
  %v764 = vadd.f32 %v703, %v728
  %v765 = vxor.u32 %v764, 2147483648
  %v766 = vmul.f32 %v765, 1.442695
  %v767 = vpow.pop %v766
  %v768 = vadd.f32 %v767, 1.0
  %v769 = vrcp.pop %v768
  %v770 = vmul.f32 %v768, %v769
  %v771 = vsub.f32 1.0, %v770
  %v772 = vmul.f32 %v769, %v771
  %v773 = vadd.f32 %v769, %v772
  %vm774 = vweird.f32 %v768
  %vm775 = vweird.f32 %v769
  %vm776 = vmor %vm774, %vm775
  %v777 = vsel %vm776, %v769, %v773
  %v778 = vand.u32 2147483647, %v768
  %vm779 = vcmp.eq.f32.partialorder %v778, 8.507059e+37
  %v780 = vand.u32 %v768, 2147483648
  %v781 = vor.u32 1.1754944e-38, %v780
  %v782 = vsel %vm779, %v781, %v777
  %v783 = vmul.f32 1.0, %v782
  %v784 = vadd.f32 %v741, %v591
  %v785 = vmul.f32 %v763, %v784
  %v786 = vadd.f32 %v704, %v785
  %v787 = vtanh.pop %v786
  %v788 = vsub.f32 1.0, %v783
  %v789 = vmul.f32 %v788, %v787
  %v790 = vmul.f32 %v783, %v695
  %v791 = vadd.f32 %v789, %v790
  %v792 = vpack.c.bf16 %v791, %v791
  %s793 = scalar_lea.vmem %s6, 8
  %794 = vst [vmem:[%s793] sm:$0xf] %v792
  %s795 = smul.u32 3, 3
  %s796 = smul.addr %s795, 8
  %s797 = scalar_lea.vmem [#allocation3], %s796
  %v798 = vld [vmem:[%s797] sm:$0xff]
  %v799 = vld [vmem:[%s797 + $0x8] sm:$0xff]
  %v800 = vld [vmem:[%s797 + $0x10] sm:$0xff]
  %801 = vmatpush.bf16.msra.mxu0 %v484
  %802 = vmatpush.bf16.msra.mxu0 %v481
  %803 = vmatpush.bf16.msra.mxu0 %v478
  %804 = vmatpush.bf16.msra.mxu0 %v475
  %805 = vmatpush.bf16.msra.mxu0 %v472
  %806 = vmatpush.bf16.msra.mxu0 %v469
  %807 = vmatpush.bf16.msra.mxu0 %v466
  %808 = vmatpush.bf16.msra.mxu0 %v463
  %809 = vmatmul.bf16.gmra.mxu0 %v792
  %v810 = vpop.f32.mrf.mxu0
  %v811 = vadd.f32 0.0, %v810
  %v812 = vpop.f32.mrf.mxu0
  %813 = vdwg.mxu0
  %814 = vmatpush.bf16.msra.mxu0 %v485
  %815 = vmatpush.bf16.msra.mxu0 %v482
  %816 = vmatpush.bf16.msra.mxu0 %v479
  %817 = vmatpush.bf16.msra.mxu0 %v476
  %818 = vmatpush.bf16.msra.mxu0 %v473
  %819 = vmatpush.bf16.msra.mxu0 %v470
  %820 = vmatpush.bf16.msra.mxu0 %v467
  %821 = vmatpush.bf16.msra.mxu0 %v464
  %822 = vmatmul.bf16.gmra.mxu0 %v792
  %v823 = vpop.f32.mrf.mxu0
  %v824 = vadd.f32 0.0, %v823
  %v825 = vpop.f32.mrf.mxu0
  %826 = vdwg.mxu0
  %827 = vmatpush.bf16.msra.mxu0 %v486
  %828 = vmatpush.bf16.msra.mxu0 %v483
  %829 = vmatpush.bf16.msra.mxu0 %v480
  %830 = vmatpush.bf16.msra.mxu0 %v477
  %831 = vmatpush.bf16.msra.mxu0 %v474
  %832 = vmatpush.bf16.msra.mxu0 %v471
  %833 = vmatpush.bf16.msra.mxu0 %v468
  %834 = vmatpush.bf16.msra.mxu0 %v465
  %835 = vmatmul.bf16.gmra.mxu0 %v792
  %v836 = vpop.f32.mrf.mxu0
  %v837 = vadd.f32 0.0, %v836
  %v838 = vpop.f32.mrf.mxu0
  %839 = vdwg.mxu0
  %v840 = vadd.f32 %v798, %v811
  %v841 = vxor.u32 %v840, 2147483648
  %v842 = vmul.f32 %v841, 1.442695
  %v843 = vpow.pop %v842
  %v844 = vadd.f32 %v843, 1.0
  %v845 = vrcp.pop %v844
  %v846 = vmul.f32 %v844, %v845
  %v847 = vsub.f32 1.0, %v846
  %v848 = vmul.f32 %v845, %v847
  %v849 = vadd.f32 %v845, %v848
  %vm850 = vweird.f32 %v844
  %vm851 = vweird.f32 %v845
  %vm852 = vmor %vm850, %vm851
  %v853 = vsel %vm852, %v845, %v849
  %v854 = vand.u32 2147483647, %v844
  %vm855 = vcmp.eq.f32.partialorder %v854, 8.507059e+37
  %v856 = vand.u32 %v844, 2147483648
  %v857 = vor.u32 1.1754944e-38, %v856
  %v858 = vsel %vm855, %v857, %v853
  %v859 = vmul.f32 1.0, %v858
  %v860 = vadd.f32 %v799, %v824
  %v861 = vxor.u32 %v860, 2147483648
  %v862 = vmul.f32 %v861, 1.442695
  %v863 = vpow.pop %v862
  %v864 = vadd.f32 %v863, 1.0
  %v865 = vrcp.pop %v864
  %v866 = vmul.f32 %v864, %v865
  %v867 = vsub.f32 1.0, %v866
  %v868 = vmul.f32 %v865, %v867
  %v869 = vadd.f32 %v865, %v868
  %vm870 = vweird.f32 %v864
  %vm871 = vweird.f32 %v865
  %vm872 = vmor %vm870, %vm871
  %v873 = vsel %vm872, %v865, %v869
  %v874 = vand.u32 2147483647, %v864
  %vm875 = vcmp.eq.f32.partialorder %v874, 8.507059e+37
  %v876 = vand.u32 %v864, 2147483648
  %v877 = vor.u32 1.1754944e-38, %v876
  %v878 = vsel %vm875, %v877, %v873
  %v879 = vmul.f32 1.0, %v878
  %v880 = vadd.f32 %v837, %v591
  %v881 = vmul.f32 %v859, %v880
  %v882 = vadd.f32 %v800, %v881
  %v883 = vtanh.pop %v882
  %v884 = vsub.f32 1.0, %v879
  %v885 = vmul.f32 %v884, %v883
  %v886 = vmul.f32 %v879, %v791
  %v887 = vadd.f32 %v885, %v886
  %v888 = vpack.c.bf16 %v887, %v887
  %s889 = scalar_lea.vmem %s6, 12
  %890 = vst [vmem:[%s889] sm:$0xf] %v888
  %s891 = smul.u32 4, 3
  %s892 = smul.addr %s891, 8
  %s893 = scalar_lea.vmem [#allocation3], %s892
  %v894 = vld [vmem:[%s893] sm:$0xff]
  %v895 = vld [vmem:[%s893 + $0x8] sm:$0xff]
  %v896 = vld [vmem:[%s893 + $0x10] sm:$0xff]
  %897 = vmatpush.bf16.msra.mxu0 %v484
  %898 = vmatpush.bf16.msra.mxu0 %v481
  %899 = vmatpush.bf16.msra.mxu0 %v478
  %900 = vmatpush.bf16.msra.mxu0 %v475
  %901 = vmatpush.bf16.msra.mxu0 %v472
  %902 = vmatpush.bf16.msra.mxu0 %v469
  %903 = vmatpush.bf16.msra.mxu0 %v466
  %904 = vmatpush.bf16.msra.mxu0 %v463
  %905 = vmatmul.bf16.gmra.mxu0 %v888
  %v906 = vpop.f32.mrf.mxu0
  %v907 = vadd.f32 0.0, %v906
  %v908 = vpop.f32.mrf.mxu0
  %909 = vdwg.mxu0
  %910 = vmatpush.bf16.msra.mxu0 %v485
  %911 = vmatpush.bf16.msra.mxu0 %v482
  %912 = vmatpush.bf16.msra.mxu0 %v479
  %913 = vmatpush.bf16.msra.mxu0 %v476
  %914 = vmatpush.bf16.msra.mxu0 %v473
  %915 = vmatpush.bf16.msra.mxu0 %v470
  %916 = vmatpush.bf16.msra.mxu0 %v467
  %917 = vmatpush.bf16.msra.mxu0 %v464
  %918 = vmatmul.bf16.gmra.mxu0 %v888
  %v919 = vpop.f32.mrf.mxu0
  %v920 = vadd.f32 0.0, %v919
  %v921 = vpop.f32.mrf.mxu0
  %922 = vdwg.mxu0
  %923 = vmatpush.bf16.msra.mxu0 %v486
  %924 = vmatpush.bf16.msra.mxu0 %v483
  %925 = vmatpush.bf16.msra.mxu0 %v480
  %926 = vmatpush.bf16.msra.mxu0 %v477
  %927 = vmatpush.bf16.msra.mxu0 %v474
  %928 = vmatpush.bf16.msra.mxu0 %v471
  %929 = vmatpush.bf16.msra.mxu0 %v468
  %930 = vmatpush.bf16.msra.mxu0 %v465
  %931 = vmatmul.bf16.gmra.mxu0 %v888
  %v932 = vpop.f32.mrf.mxu0
  %v933 = vadd.f32 0.0, %v932
  %v934 = vpop.f32.mrf.mxu0
  %935 = vdwg.mxu0
  %v936 = vadd.f32 %v894, %v907
  %v937 = vxor.u32 %v936, 2147483648
  %v938 = vmul.f32 %v937, 1.442695
  %v939 = vpow.pop %v938
  %v940 = vadd.f32 %v939, 1.0
  %v941 = vrcp.pop %v940
  %v942 = vmul.f32 %v940, %v941
  %v943 = vsub.f32 1.0, %v942
  %v944 = vmul.f32 %v941, %v943
  %v945 = vadd.f32 %v941, %v944
  %vm946 = vweird.f32 %v940
  %vm947 = vweird.f32 %v941
  %vm948 = vmor %vm946, %vm947
  %v949 = vsel %vm948, %v941, %v945
  %v950 = vand.u32 2147483647, %v940
  %vm951 = vcmp.eq.f32.partialorder %v950, 8.507059e+37
  %v952 = vand.u32 %v940, 2147483648
  %v953 = vor.u32 1.1754944e-38, %v952
  %v954 = vsel %vm951, %v953, %v949
  %v955 = vmul.f32 1.0, %v954
  %v956 = vadd.f32 %v895, %v920
  %v957 = vxor.u32 %v956, 2147483648
  %v958 = vmul.f32 %v957, 1.442695
  %v959 = vpow.pop %v958
  %v960 = vadd.f32 %v959, 1.0
  %v961 = vrcp.pop %v960
  %v962 = vmul.f32 %v960, %v961
  %v963 = vsub.f32 1.0, %v962
  %v964 = vmul.f32 %v961, %v963
  %v965 = vadd.f32 %v961, %v964
  %vm966 = vweird.f32 %v960
  %vm967 = vweird.f32 %v961
  %vm968 = vmor %vm966, %vm967
  %v969 = vsel %vm968, %v961, %v965
  %v970 = vand.u32 2147483647, %v960
  %vm971 = vcmp.eq.f32.partialorder %v970, 8.507059e+37
  %v972 = vand.u32 %v960, 2147483648
  %v973 = vor.u32 1.1754944e-38, %v972
  %v974 = vsel %vm971, %v973, %v969
  %v975 = vmul.f32 1.0, %v974
  %v976 = vadd.f32 %v933, %v591
  %v977 = vmul.f32 %v955, %v976
  %v978 = vadd.f32 %v896, %v977
  %v979 = vtanh.pop %v978
  %v980 = vsub.f32 1.0, %v975
  %v981 = vmul.f32 %v980, %v979
  %v982 = vmul.f32 %v975, %v887
  %v983 = vadd.f32 %v981, %v982
  %v984 = vpack.c.bf16 %v983, %v983
  %s985 = scalar_lea.vmem %s6, 16
  %986 = vst [vmem:[%s985] sm:$0xf] %v984
  %s987 = smul.u32 5, 3
  %s988 = smul.addr %s987, 8
  %s989 = scalar_lea.vmem [#allocation3], %s988
  %v990 = vld [vmem:[%s989] sm:$0xff]
  %v991 = vld [vmem:[%s989 + $0x8] sm:$0xff]
  %v992 = vld [vmem:[%s989 + $0x10] sm:$0xff]
  %993 = vmatpush.bf16.msra.mxu0 %v484
  %994 = vmatpush.bf16.msra.mxu0 %v481
  %995 = vmatpush.bf16.msra.mxu0 %v478
  %996 = vmatpush.bf16.msra.mxu0 %v475
  %997 = vmatpush.bf16.msra.mxu0 %v472
  %998 = vmatpush.bf16.msra.mxu0 %v469
  %999 = vmatpush.bf16.msra.mxu0 %v466
  %1000 = vmatpush.bf16.msra.mxu0 %v463
  %1001 = vmatmul.bf16.gmra.mxu0 %v984
  %v1002 = vpop.f32.mrf.mxu0
  %v1003 = vadd.f32 0.0, %v1002
  %v1004 = vpop.f32.mrf.mxu0
  %1005 = vdwg.mxu0
  %1006 = vmatpush.bf16.msra.mxu0 %v485
  %1007 = vmatpush.bf16.msra.mxu0 %v482
  %1008 = vmatpush.bf16.msra.mxu0 %v479
  %1009 = vmatpush.bf16.msra.mxu0 %v476
  %1010 = vmatpush.bf16.msra.mxu0 %v473
  %1011 = vmatpush.bf16.msra.mxu0 %v470
  %1012 = vmatpush.bf16.msra.mxu0 %v467
  %1013 = vmatpush.bf16.msra.mxu0 %v464
  %1014 = vmatmul.bf16.gmra.mxu0 %v984
  %v1015 = vpop.f32.mrf.mxu0
  %v1016 = vadd.f32 0.0, %v1015
  %v1017 = vpop.f32.mrf.mxu0
  %1018 = vdwg.mxu0
  %1019 = vmatpush.bf16.msra.mxu0 %v486
  %1020 = vmatpush.bf16.msra.mxu0 %v483
  %1021 = vmatpush.bf16.msra.mxu0 %v480
  %1022 = vmatpush.bf16.msra.mxu0 %v477
  %1023 = vmatpush.bf16.msra.mxu0 %v474
  %1024 = vmatpush.bf16.msra.mxu0 %v471
  %1025 = vmatpush.bf16.msra.mxu0 %v468
  %1026 = vmatpush.bf16.msra.mxu0 %v465
  %1027 = vmatmul.bf16.gmra.mxu0 %v984
  %v1028 = vpop.f32.mrf.mxu0
  %v1029 = vadd.f32 0.0, %v1028
  %v1030 = vpop.f32.mrf.mxu0
  %1031 = vdwg.mxu0
  %v1032 = vadd.f32 %v990, %v1003
  %v1033 = vxor.u32 %v1032, 2147483648
  %v1034 = vmul.f32 %v1033, 1.442695
  %v1035 = vpow.pop %v1034
  %v1036 = vadd.f32 %v1035, 1.0
  %v1037 = vrcp.pop %v1036
  %v1038 = vmul.f32 %v1036, %v1037
  %v1039 = vsub.f32 1.0, %v1038
  %v1040 = vmul.f32 %v1037, %v1039
  %v1041 = vadd.f32 %v1037, %v1040
  %vm1042 = vweird.f32 %v1036
  %vm1043 = vweird.f32 %v1037
  %vm1044 = vmor %vm1042, %vm1043
  %v1045 = vsel %vm1044, %v1037, %v1041
  %v1046 = vand.u32 2147483647, %v1036
  %vm1047 = vcmp.eq.f32.partialorder %v1046, 8.507059e+37
  %v1048 = vand.u32 %v1036, 2147483648
  %v1049 = vor.u32 1.1754944e-38, %v1048
  %v1050 = vsel %vm1047, %v1049, %v1045
  %v1051 = vmul.f32 1.0, %v1050
  %v1052 = vadd.f32 %v991, %v1016
  %v1053 = vxor.u32 %v1052, 2147483648
  %v1054 = vmul.f32 %v1053, 1.442695
  %v1055 = vpow.pop %v1054
  %v1056 = vadd.f32 %v1055, 1.0
  %v1057 = vrcp.pop %v1056
  %v1058 = vmul.f32 %v1056, %v1057
  %v1059 = vsub.f32 1.0, %v1058
  %v1060 = vmul.f32 %v1057, %v1059
  %v1061 = vadd.f32 %v1057, %v1060
  %vm1062 = vweird.f32 %v1056
  %vm1063 = vweird.f32 %v1057
  %vm1064 = vmor %vm1062, %vm1063
  %v1065 = vsel %vm1064, %v1057, %v1061
  %v1066 = vand.u32 2147483647, %v1056
  %vm1067 = vcmp.eq.f32.partialorder %v1066, 8.507059e+37
  %v1068 = vand.u32 %v1056, 2147483648
  %v1069 = vor.u32 1.1754944e-38, %v1068
  %v1070 = vsel %vm1067, %v1069, %v1065
  %v1071 = vmul.f32 1.0, %v1070
  %v1072 = vadd.f32 %v1029, %v591
  %v1073 = vmul.f32 %v1051, %v1072
  %v1074 = vadd.f32 %v992, %v1073
  %v1075 = vtanh.pop %v1074
  %v1076 = vsub.f32 1.0, %v1071
  %v1077 = vmul.f32 %v1076, %v1075
  %v1078 = vmul.f32 %v1071, %v983
  %v1079 = vadd.f32 %v1077, %v1078
  %v1080 = vpack.c.bf16 %v1079, %v1079
  %s1081 = scalar_lea.vmem %s6, 20
  %1082 = vst [vmem:[%s1081] sm:$0xf] %v1080
  %s1083 = smul.u32 6, 3
  %s1084 = smul.addr %s1083, 8
  %s1085 = scalar_lea.vmem [#allocation3], %s1084
  %v1086 = vld [vmem:[%s1085] sm:$0xff]
  %v1087 = vld [vmem:[%s1085 + $0x8] sm:$0xff]
  %v1088 = vld [vmem:[%s1085 + $0x10] sm:$0xff]
  %1089 = vmatpush.bf16.msra.mxu0 %v484
  %1090 = vmatpush.bf16.msra.mxu0 %v481
  %1091 = vmatpush.bf16.msra.mxu0 %v478
  %1092 = vmatpush.bf16.msra.mxu0 %v475
  %1093 = vmatpush.bf16.msra.mxu0 %v472
  %1094 = vmatpush.bf16.msra.mxu0 %v469
  %1095 = vmatpush.bf16.msra.mxu0 %v466
  %1096 = vmatpush.bf16.msra.mxu0 %v463
  %1097 = vmatmul.bf16.gmra.mxu0 %v1080
  %v1098 = vpop.f32.mrf.mxu0
  %v1099 = vadd.f32 0.0, %v1098
  %v1100 = vpop.f32.mrf.mxu0
  %1101 = vdwg.mxu0
  %1102 = vmatpush.bf16.msra.mxu0 %v485
  %1103 = vmatpush.bf16.msra.mxu0 %v482
  %1104 = vmatpush.bf16.msra.mxu0 %v479
  %1105 = vmatpush.bf16.msra.mxu0 %v476
  %1106 = vmatpush.bf16.msra.mxu0 %v473
  %1107 = vmatpush.bf16.msra.mxu0 %v470
  %1108 = vmatpush.bf16.msra.mxu0 %v467
  %1109 = vmatpush.bf16.msra.mxu0 %v464
  %1110 = vmatmul.bf16.gmra.mxu0 %v1080
  %v1111 = vpop.f32.mrf.mxu0
  %v1112 = vadd.f32 0.0, %v1111
  %v1113 = vpop.f32.mrf.mxu0
  %1114 = vdwg.mxu0
  %1115 = vmatpush.bf16.msra.mxu0 %v486
  %1116 = vmatpush.bf16.msra.mxu0 %v483
  %1117 = vmatpush.bf16.msra.mxu0 %v480
  %1118 = vmatpush.bf16.msra.mxu0 %v477
  %1119 = vmatpush.bf16.msra.mxu0 %v474
  %1120 = vmatpush.bf16.msra.mxu0 %v471
  %1121 = vmatpush.bf16.msra.mxu0 %v468
  %1122 = vmatpush.bf16.msra.mxu0 %v465
  %1123 = vmatmul.bf16.gmra.mxu0 %v1080
  %v1124 = vpop.f32.mrf.mxu0
  %v1125 = vadd.f32 0.0, %v1124
  %v1126 = vpop.f32.mrf.mxu0
  %1127 = vdwg.mxu0
  %v1128 = vadd.f32 %v1086, %v1099
  %v1129 = vxor.u32 %v1128, 2147483648
  %v1130 = vmul.f32 %v1129, 1.442695
  %v1131 = vpow.pop %v1130
  %v1132 = vadd.f32 %v1131, 1.0
  %v1133 = vrcp.pop %v1132
  %v1134 = vmul.f32 %v1132, %v1133
  %v1135 = vsub.f32 1.0, %v1134
  %v1136 = vmul.f32 %v1133, %v1135
  %v1137 = vadd.f32 %v1133, %v1136
  %vm1138 = vweird.f32 %v1132
  %vm1139 = vweird.f32 %v1133
  %vm1140 = vmor %vm1138, %vm1139
  %v1141 = vsel %vm1140, %v1133, %v1137
  %v1142 = vand.u32 2147483647, %v1132
  %vm1143 = vcmp.eq.f32.partialorder %v1142, 8.507059e+37
  %v1144 = vand.u32 %v1132, 2147483648
  %v1145 = vor.u32 1.1754944e-38, %v1144
  %v1146 = vsel %vm1143, %v1145, %v1141
  %v1147 = vmul.f32 1.0, %v1146
  %v1148 = vadd.f32 %v1087, %v1112
  %v1149 = vxor.u32 %v1148, 2147483648
  %v1150 = vmul.f32 %v1149, 1.442695
  %v1151 = vpow.pop %v1150
  %v1152 = vadd.f32 %v1151, 1.0
  %v1153 = vrcp.pop %v1152
  %v1154 = vmul.f32 %v1152, %v1153
  %v1155 = vsub.f32 1.0, %v1154
  %v1156 = vmul.f32 %v1153, %v1155
  %v1157 = vadd.f32 %v1153, %v1156
  %vm1158 = vweird.f32 %v1152
  %vm1159 = vweird.f32 %v1153
  %vm1160 = vmor %vm1158, %vm1159
  %v1161 = vsel %vm1160, %v1153, %v1157
  %v1162 = vand.u32 2147483647, %v1152
  %vm1163 = vcmp.eq.f32.partialorder %v1162, 8.507059e+37
  %v1164 = vand.u32 %v1152, 2147483648
  %v1165 = vor.u32 1.1754944e-38, %v1164
  %v1166 = vsel %vm1163, %v1165, %v1161
  %v1167 = vmul.f32 1.0, %v1166
  %v1168 = vadd.f32 %v1125, %v591
  %v1169 = vmul.f32 %v1147, %v1168
  %v1170 = vadd.f32 %v1088, %v1169
  %v1171 = vtanh.pop %v1170
  %v1172 = vsub.f32 1.0, %v1167
  %v1173 = vmul.f32 %v1172, %v1171
  %v1174 = vmul.f32 %v1167, %v1079
  %v1175 = vadd.f32 %v1173, %v1174
  %v1176 = vpack.c.bf16 %v1175, %v1175
  %s1177 = scalar_lea.vmem %s6, 24
  %1178 = vst [vmem:[%s1177] sm:$0xf] %v1176
  %s1179 = smul.u32 7, 3
  %s1180 = smul.addr %s1179, 8
  %s1181 = scalar_lea.vmem [#allocation3], %s1180
  %v1182 = vld [vmem:[%s1181] sm:$0xff]
  %v1183 = vld [vmem:[%s1181 + $0x8] sm:$0xff]
  %v1184 = vld [vmem:[%s1181 + $0x10] sm:$0xff]
  %1185 = vmatpush.bf16.msra.mxu0 %v484
  %1186 = vmatpush.bf16.msra.mxu0 %v481
  %1187 = vmatpush.bf16.msra.mxu0 %v478
  %1188 = vmatpush.bf16.msra.mxu0 %v475
  %1189 = vmatpush.bf16.msra.mxu0 %v472
  %1190 = vmatpush.bf16.msra.mxu0 %v469
  %1191 = vmatpush.bf16.msra.mxu0 %v466
  %1192 = vmatpush.bf16.msra.mxu0 %v463
  %1193 = vmatmul.bf16.gmra.mxu0 %v1176
  %v1194 = vpop.f32.mrf.mxu0
  %v1195 = vadd.f32 0.0, %v1194
  %v1196 = vpop.f32.mrf.mxu0
  %1197 = vdwg.mxu0
  %1198 = vmatpush.bf16.msra.mxu0 %v485
  %1199 = vmatpush.bf16.msra.mxu0 %v482
  %1200 = vmatpush.bf16.msra.mxu0 %v479
  %1201 = vmatpush.bf16.msra.mxu0 %v476
  %1202 = vmatpush.bf16.msra.mxu0 %v473
  %1203 = vmatpush.bf16.msra.mxu0 %v470
  %1204 = vmatpush.bf16.msra.mxu0 %v467
  %1205 = vmatpush.bf16.msra.mxu0 %v464
  %1206 = vmatmul.bf16.gmra.mxu0 %v1176
  %v1207 = vpop.f32.mrf.mxu0
  %v1208 = vadd.f32 0.0, %v1207
  %v1209 = vpop.f32.mrf.mxu0
  %1210 = vdwg.mxu0
  %1211 = vmatpush.bf16.msra.mxu0 %v486
  %1212 = vmatpush.bf16.msra.mxu0 %v483
  %1213 = vmatpush.bf16.msra.mxu0 %v480
  %1214 = vmatpush.bf16.msra.mxu0 %v477
  %1215 = vmatpush.bf16.msra.mxu0 %v474
  %1216 = vmatpush.bf16.msra.mxu0 %v471
  %1217 = vmatpush.bf16.msra.mxu0 %v468
  %1218 = vmatpush.bf16.msra.mxu0 %v465
  %1219 = vmatmul.bf16.gmra.mxu0 %v1176
  %v1220 = vpop.f32.mrf.mxu0
  %v1221 = vadd.f32 0.0, %v1220
  %v1222 = vpop.f32.mrf.mxu0
  %1223 = vdwg.mxu0
  %v1224 = vadd.f32 %v1182, %v1195
  %v1225 = vxor.u32 %v1224, 2147483648
  %v1226 = vmul.f32 %v1225, 1.442695
  %v1227 = vpow.pop %v1226
  %v1228 = vadd.f32 %v1227, 1.0
  %v1229 = vrcp.pop %v1228
  %v1230 = vmul.f32 %v1228, %v1229
  %v1231 = vsub.f32 1.0, %v1230
  %v1232 = vmul.f32 %v1229, %v1231
  %v1233 = vadd.f32 %v1229, %v1232
  %vm1234 = vweird.f32 %v1228
  %vm1235 = vweird.f32 %v1229
  %vm1236 = vmor %vm1234, %vm1235
  %v1237 = vsel %vm1236, %v1229, %v1233
  %v1238 = vand.u32 2147483647, %v1228
  %vm1239 = vcmp.eq.f32.partialorder %v1238, 8.507059e+37
  %v1240 = vand.u32 %v1228, 2147483648
  %v1241 = vor.u32 1.1754944e-38, %v1240
  %v1242 = vsel %vm1239, %v1241, %v1237
  %v1243 = vmul.f32 1.0, %v1242
  %v1244 = vadd.f32 %v1183, %v1208
  %v1245 = vxor.u32 %v1244, 2147483648
  %v1246 = vmul.f32 %v1245, 1.442695
  %v1247 = vpow.pop %v1246
  %v1248 = vadd.f32 %v1247, 1.0
  %v1249 = vrcp.pop %v1248
  %v1250 = vmul.f32 %v1248, %v1249
  %v1251 = vsub.f32 1.0, %v1250
  %v1252 = vmul.f32 %v1249, %v1251
  %v1253 = vadd.f32 %v1249, %v1252
  %vm1254 = vweird.f32 %v1248
  %vm1255 = vweird.f32 %v1249
  %vm1256 = vmor %vm1254, %vm1255
  %v1257 = vsel %vm1256, %v1249, %v1253
  %v1258 = vand.u32 2147483647, %v1248
  %vm1259 = vcmp.eq.f32.partialorder %v1258, 8.507059e+37
  %v1260 = vand.u32 %v1248, 2147483648
  %v1261 = vor.u32 1.1754944e-38, %v1260
  %v1262 = vsel %vm1259, %v1261, %v1257
  %v1263 = vmul.f32 1.0, %v1262
  %v1264 = vadd.f32 %v1221, %v591
  %v1265 = vmul.f32 %v1243, %v1264
  %v1266 = vadd.f32 %v1184, %v1265
  %v1267 = vtanh.pop %v1266
  %v1268 = vsub.f32 1.0, %v1263
  %v1269 = vmul.f32 %v1268, %v1267
  %v1270 = vmul.f32 %v1263, %v1175
  %v1271 = vadd.f32 %v1269, %v1270
  %v1272 = vpack.c.bf16 %v1271, %v1271
  %s1273 = scalar_lea.vmem %s6, 28
  %1274 = vst [vmem:[%s1273] sm:$0xf] %v1272
  %1275 = vst [vmem:[#allocation2] sm:$0xff] %v1271
  %1276 = vst [vmem:[%s7] sm:$0xff] %v1271
  // Predicated region
  $region30: #{gru_model_forward.2} parent=0 // pred_check
    _
  $region31: #{gru_model_forward.2} parent=0 // pred_check_branch
    %1278 = sbr.rel (0) target = $region33
  $region32: #{gru_model_forward.2} parent=0 // pred_region
    _
  $region33: #{gru_model_forward.2} parent=0 // pred_fallthru
    _
  // Predicated region
  $region34: #{gru_model_forward.2} parent=0 // pred_check
    _
  $region35: #{gru_model_forward.2} parent=0 // pred_check_branch
    %1280 = sbr.rel (0) target = $region37
  $region36: #{gru_model_forward.2} parent=0 // pred_region
    _
  $region37: #{gru_model_forward.2} parent=0 // pred_fallthru
    _
  // Predicated region
  $region38: #{gru_model_forward.2} parent=0 // pred_check
    _
  $region39: #{gru_model_forward.2} parent=0 // pred_check_branch
    %1282 = sbr.rel (0) target = $region41
  $region40: #{gru_model_forward.2} parent=0 // pred_region
    _
  $region41: #{gru_model_forward.2} parent=0 // pred_fallthru
    _
  // Predicated region
  $region42: #{gru_model_forward.2} parent=0 // pred_check
    _
  $region43: #{gru_model_forward.2} parent=0 // pred_check_branch
    %1284 = sbr.rel (0) target = $region45
  $region44: #{gru_model_forward.2} parent=0 // pred_region
    _
  $region45: #{gru_model_forward.2} parent=0 // pred_fallthru
    _

</llo_original>
